<compile_context>
chip_gen: v6e
topology: v6e:2x2x1
jax: 0.10.0
libtpu: 0.0.40
codegen_flags: <defaults>
</compile_context>

<pallas_src>
import functools

import numpy as np
import jax
import jax.numpy as jnp
from jax.experimental import pallas as pl
from jax.experimental.pallas import tpu as pltpu


def _round_up(x, m):
    return (x + m - 1) // m * m


def _gather_kernel(idx_ref, table_ref, out_ref, *, p, d, v, gp):
    """Gather G = p*gp embedding rows for this grid step.

    idx_ref:   (1, p*gp, 1) int32  -- q-major packed row indices for the chunk
    table_ref: (v, d)       f32    -- full embedding table (VMEM resident)
    out_ref:   (gp, p*d)    f32    -- lane-dense output block
    """
    table = table_ref[...]
    iota = jax.lax.broadcasted_iota(jnp.int32, (gp, v), 1)
    for q in range(p):                                   # static, p = 128 // d
        idx_q = idx_ref[0, q * gp:(q + 1) * gp, :]       # (gp, 1) int32
        onehot = (idx_q == iota).astype(table.dtype)     # (gp, v)
        rows = jnp.dot(onehot, table,
                       preferred_element_type=jnp.float32,
                       precision=jax.lax.Precision.HIGHEST)  # exact 0/1 select
        out_ref[:, q * d:(q + 1) * d] = rows.astype(out_ref.dtype)


def features_embedding(x, offsets, table, *, rows_per_step=512):
    """x: (B, F) int, offsets: (F,) int, table: (V, D) f32 -> (B, F, D) f32."""
    B, F = x.shape
    V, D = table.shape

    # Fold offsets into the indices on the wrapper side and clamp for safety.
    idx = (x.astype(jnp.int32) + offsets.astype(jnp.int32)[None, :]).reshape(B * F)
    idx = jnp.clip(idx, 0, V - 1)

    # Lane-packing factor: p consecutive gathered rows share one output row so
    # the output block's last dim is >= 128 (lane dense).
    LANE = 128
    p = LANE // D if (D < LANE and LANE % D == 0) else 1
    align = 8 * p                                  # sublane multiple * packing
    n = B * F
    G = _round_up(min(rows_per_step, _round_up(n, align)), align)
    n_pad = _round_up(n, G)
    num_chunks = n_pad // G
    gp = G // p

    # Pad (with a valid row id) and rearrange the indices q-major:
    #   idx_arr[i, q*gp + r, 0] = idx[i*G + r*p + q]
    idx_padded = jnp.pad(idx, (0, n_pad - n))
    idx_arr = (idx_padded.reshape(num_chunks, gp, p)
               .transpose(0, 2, 1)
               .reshape(num_chunks, G, 1))

    kernel = functools.partial(_gather_kernel, p=p, d=D, v=V, gp=gp)

    # TODO(synk): for embedding tables too large for VMEM, switch to a chunked
    # HBM-resident table (memory_space=pl.ANY) with a multi-slot async-copy
    # gather instead of the table-in-VMEM one-hot matmul.
    out_packed = pl.pallas_call(
        kernel,
        out_shape=jax.ShapeDtypeStruct((n_pad // p, p * D), table.dtype),
        grid=(num_chunks,),
        in_specs=[
            pl.BlockSpec((1, G, 1), lambda i: (i, 0, 0)),   # index chunk
            pl.BlockSpec((V, D), lambda i: (0, 0)),         # full table in VMEM
        ],
        out_specs=pl.BlockSpec((gp, p * D), lambda i: (i, 0)),
        compiler_params=pltpu.CompilerParams(
            dimension_semantics=("parallel",)),             # 2 TCs on v7x
    )(idx_arr, table)

    # Undo the lane packing: (n_pad//p, p*D) row-major == (n_pad, D).
    return out_packed.reshape(n_pad, D)[:n].reshape(B, F, D)


if __name__ == "__main__":
    # Module config (small, consistent with the forward pass)
    field_dims = (5, 7, 4, 8)          # F = 4 fields, vocab V = 24
    embed_dim = 32
    batch = 2

    V = int(sum(field_dims))
    F = len(field_dims)
    D = embed_dim

    key = jax.random.PRNGKey(0)
    k_w, k_x = jax.random.split(key)

    # Xavier-uniform init of the embedding table (as in the PyTorch module).
    bound = float(np.sqrt(6.0 / (V + D)))
    table = jax.random.uniform(k_w, (V, D), dtype=jnp.float32,
                               minval=-bound, maxval=bound)

    # Per-field offsets: (0, cumsum(field_dims)[:-1])
    offsets = jnp.asarray(
        np.concatenate(([0], np.cumsum(field_dims)[:-1])).astype(np.int32))

    # Input indices: each field index is within its own field's cardinality.
    x_cols = []
    keys = jax.random.split(k_x, F)
    for f, fd in enumerate(field_dims):
        x_cols.append(jax.random.randint(keys[f], (batch,), 0, fd, dtype=jnp.int32))
    x = jnp.stack(x_cols, axis=1)       # (batch, F) int32

    out = features_embedding(x, offsets, table)
    out = jax.block_until_ready(out)

    # Silent correctness check against plain-JAX reference gather.
    ref = jnp.take(table, x + offsets[None, :], axis=0)
    assert out.shape == (batch, F, D)
    assert jnp.allclose(out, ref, rtol=1e-5, atol=1e-6), "mismatch vs reference gather"

    print("KERNEL_OK")
</pallas_src>

<mosaic_0001>
module attributes {stable_mosaic.version = 11 : i64} {
  func.func @_gather_kernel(%arg0: i32, %arg1: memref<1x32x1xi32, #tpu.memory_space<vmem>>, %arg2: memref<24x32xf32, #tpu.memory_space<vmem>>, %arg3: memref<8x128xf32, #tpu.memory_space<vmem>>) attributes {dimension_semantics = [#tpu.dimension_semantics<parallel>], iteration_bounds = array<i64: 1>, scalar_prefetch = 0 : i64, scratch_operands = 0 : i64, tpu.core_type = #tpu.core_type<tc>, window_params = [{transform_indices = @transform_0, window_bounds = array<i64: 1, 32, 1>}, {pipeline_mode = #tpu.pipeline_mode<synchronous>, transform_indices = @transform_1, window_bounds = array<i64: 24, 32>}, {transform_indices = @transform_2, window_bounds = array<i64: 8, 128>}]} {
    %c0 = arith.constant 0 : index
    %c0_0 = arith.constant 0 : index
    %0 = vector.load %arg2[%c0, %c0_0] : memref<24x32xf32, #tpu.memory_space<vmem>>, vector<24x32xf32>
    %1 = tpu.iota {dimensions = array<i32: 1>} : vector<8x24xi32>
    %c0_1 = arith.constant 0 : index
    %c0_2 = arith.constant 0 : index
    %c0_3 = arith.constant 0 : index
    %2 = vector.load %arg1[%c0_1, %c0_2, %c0_3] : memref<1x32x1xi32, #tpu.memory_space<vmem>>, vector<1x8x1xi32>
    %3 = vector.shape_cast %2 : vector<1x8x1xi32> to vector<8x1xi32>
    %4 = vector.broadcast %3 : vector<8x1xi32> to vector<8x24xi32>
    %5 = arith.cmpi eq, %4, %1 : vector<8x24xi32>
    %6 = arith.extui %5 : vector<8x24xi1> to vector<8x24xi32>
    %7 = arith.sitofp %6 : vector<8x24xi32> to vector<8x24xf32>
    %cst = arith.constant dense<0.000000e+00> : vector<8x32xf32>
    %8 = tpu.matmul %7, %0, %cst {dimension_numbers = #tpu.dot_dimension_numbers<[1], [0], [0], [1], [0, 0, 1, 1], [], []>, precision = #tpu.contract_precision<fp32>} : vector<8x24xf32>, vector<24x32xf32>, vector<8x32xf32> -> vector<8x32xf32>
    %c0_4 = arith.constant 0 : index
    %c0_5 = arith.constant 0 : index
    %9 = vector.load %arg3[%c0_4, %c0_5] : memref<8x128xf32, #tpu.memory_space<vmem>>, vector<8x32xf32>
    tpu.vector_store %arg3[%c0_4, %c0_5], %8 {strides = array<i32>} : memref<8x128xf32, #tpu.memory_space<vmem>>, vector<8x32xf32>,
    %c0_6 = arith.constant 0 : index
    %c8 = arith.constant 8 : index
    %c0_7 = arith.constant 0 : index
    %10 = vector.load %arg1[%c0_6, %c8, %c0_7] : memref<1x32x1xi32, #tpu.memory_space<vmem>>, vector<1x8x1xi32>
    %11 = vector.shape_cast %10 : vector<1x8x1xi32> to vector<8x1xi32>
    %12 = vector.broadcast %11 : vector<8x1xi32> to vector<8x24xi32>
    %13 = arith.cmpi eq, %12, %1 : vector<8x24xi32>
    %14 = arith.extui %13 : vector<8x24xi1> to vector<8x24xi32>
    %15 = arith.sitofp %14 : vector<8x24xi32> to vector<8x24xf32>
    %cst_8 = arith.constant dense<0.000000e+00> : vector<8x32xf32>
    %16 = tpu.matmul %15, %0, %cst_8 {dimension_numbers = #tpu.dot_dimension_numbers<[1], [0], [0], [1], [0, 0, 1, 1], [], []>, precision = #tpu.contract_precision<fp32>} : vector<8x24xf32>, vector<24x32xf32>, vector<8x32xf32> -> vector<8x32xf32>
    %c0_9 = arith.constant 0 : index
    %c32 = arith.constant 32 : index
    %17 = vector.load %arg3[%c0_9, %c32] : memref<8x128xf32, #tpu.memory_space<vmem>>, vector<8x32xf32>
    tpu.vector_store %arg3[%c0_9, %c32], %16 {strides = array<i32>} : memref<8x128xf32, #tpu.memory_space<vmem>>, vector<8x32xf32>,
    %c0_10 = arith.constant 0 : index
    %c16 = arith.constant 16 : index
    %c0_11 = arith.constant 0 : index
    %18 = vector.load %arg1[%c0_10, %c16, %c0_11] : memref<1x32x1xi32, #tpu.memory_space<vmem>>, vector<1x8x1xi32>
    %19 = vector.shape_cast %18 : vector<1x8x1xi32> to vector<8x1xi32>
    %20 = vector.broadcast %19 : vector<8x1xi32> to vector<8x24xi32>
    %21 = arith.cmpi eq, %20, %1 : vector<8x24xi32>
    %22 = arith.extui %21 : vector<8x24xi1> to vector<8x24xi32>
    %23 = arith.sitofp %22 : vector<8x24xi32> to vector<8x24xf32>
    %cst_12 = arith.constant dense<0.000000e+00> : vector<8x32xf32>
    %24 = tpu.matmul %23, %0, %cst_12 {dimension_numbers = #tpu.dot_dimension_numbers<[1], [0], [0], [1], [0, 0, 1, 1], [], []>, precision = #tpu.contract_precision<fp32>} : vector<8x24xf32>, vector<24x32xf32>, vector<8x32xf32> -> vector<8x32xf32>
    %c0_13 = arith.constant 0 : index
    %c64 = arith.constant 64 : index
    %25 = vector.load %arg3[%c0_13, %c64] : memref<8x128xf32, #tpu.memory_space<vmem>>, vector<8x32xf32>
    tpu.vector_store %arg3[%c0_13, %c64], %24 {strides = array<i32>} : memref<8x128xf32, #tpu.memory_space<vmem>>, vector<8x32xf32>,
    %c0_14 = arith.constant 0 : index
    %c24 = arith.constant 24 : index
    %c0_15 = arith.constant 0 : index
    %26 = vector.load %arg1[%c0_14, %c24, %c0_15] : memref<1x32x1xi32, #tpu.memory_space<vmem>>, vector<1x8x1xi32>
    %27 = vector.shape_cast %26 : vector<1x8x1xi32> to vector<8x1xi32>
    %28 = vector.broadcast %27 : vector<8x1xi32> to vector<8x24xi32>
    %29 = arith.cmpi eq, %28, %1 : vector<8x24xi32>
    %30 = arith.extui %29 : vector<8x24xi1> to vector<8x24xi32>
    %31 = arith.sitofp %30 : vector<8x24xi32> to vector<8x24xf32>
    %cst_16 = arith.constant dense<0.000000e+00> : vector<8x32xf32>
    %32 = tpu.matmul %31, %0, %cst_16 {dimension_numbers = #tpu.dot_dimension_numbers<[1], [0], [0], [1], [0, 0, 1, 1], [], []>, precision = #tpu.contract_precision<fp32>} : vector<8x24xf32>, vector<24x32xf32>, vector<8x32xf32> -> vector<8x32xf32>
    %c0_17 = arith.constant 0 : index
    %c96 = arith.constant 96 : index
    %33 = vector.load %arg3[%c0_17, %c96] : memref<8x128xf32, #tpu.memory_space<vmem>>, vector<8x32xf32>
    tpu.vector_store %arg3[%c0_17, %c96], %32 {strides = array<i32>} : memref<8x128xf32, #tpu.memory_space<vmem>>, vector<8x32xf32>,
    return
  }
  func.func @transform_0(%arg0: i32) -> (i32, i32, i32) {
    %c0_i32 = arith.constant 0 : i32
    %c0_i32_0 = arith.constant 0 : i32
    %c0_i32_1 = arith.constant 0 : i32
    return %arg0, %c0_i32, %c0_i32_0 : i32, i32, i32
  }
  func.func @transform_1(%arg0: i32) -> (i32, i32) {
    %c0_i32 = arith.constant 0 : i32
    %c0_i32_0 = arith.constant 0 : i32
    %c0_i32_1 = arith.constant 0 : i32
    return %c0_i32, %c0_i32_0 : i32, i32
  }
  func.func @transform_2(%arg0: i32) -> (i32, i32) {
    %c0_i32 = arith.constant 0 : i32
    %c0_i32_0 = arith.constant 0 : i32
    return %arg0, %c0_i32 : i32, i32
  }
}

</mosaic_0001>

<llo_original>
// kernel: tpu_custom_call.1
$region0: #{tpu_custom_call.1}
  #allocation0 [shape = 'u32[]', space=smem, size = 0x4, offset = 0x4, fixed_abs, tag = 'smem constant byte address 0x4 - core index']
  #allocation1 [shape = 'u32[144,128]{1,0:T(1,128)}', space=vmem, size = 0x12000, scoped, tag = 'internal scratch']
  %s0 = inlined_call_operand.vmem [shape: s32[1,32,1], index: 0, kind: input, shape index: {}]
  %s1 = inlined_call_operand.vmem [shape: f32[24,32], index: 1, kind: input, shape index: {}]
  %s2 = inlined_call_operand.hbm [shape: f32[8,128], index: 2, kind: output, shape index: {}]
  %s3 = sld [smem:[#allocation0]]
  $region18: #{tpu_custom_call.1} parent=0
    _
  %s5 = ssub.s32 1, %s3
  %s6 = scalar_select 0, %s5, %s3
  $region1: #{tpu_custom_call.1} parent=0
    #allocation2 [shape = 'u8[4096]{0}', space=vmem, size = 0x1000, scoped, tag = 'output window, operand 0, single buffered']
    #allocation3 [shape = 's32[1]{0}', space=sflag, size = 0x4, scoped, tag = 'scoped memory for tpu_custom_call.1']
    %7 = vsyncpa [#allocation3], 0
    // Predicated region
    $region2: #{tpu_custom_call.1} parent=1 // pred_check
      _
    $region3: #{tpu_custom_call.1} parent=1 // pred_check_branch
      %9 = sbr.rel (0) target = $region5
    $region4: #{tpu_custom_call.1} parent=1 // pred_region
      _
    $region5: #{tpu_custom_call.1} parent=1 // pred_fallthru
      _
    // Predicated region
    $region6: #{tpu_custom_call.1} parent=1 // pred_check
      _
    $region7: #{tpu_custom_call.1} parent=1 // pred_check_branch
      %11 = sbr.rel (0) target = $region9
    $region8: #{tpu_custom_call.1} parent=1 // pred_region
      _
    $region9: #{tpu_custom_call.1} parent=1 // pred_fallthru
      _
    %v12 = vld [vmem:[%s1] sm:$0xff]
    %v13 = vld [vmem:[%s1 + $0x8] sm:$0xff]
    %v14 = vld [vmem:[%s1 + $0x10] sm:$0xff]
    %v15 = vlaneseq
    %v16 = vand.u32 %v15, 127
    %v17 = vld [vmem:[%s0] sm:$0xff]
    %18 = vset.pattern.permute.xlu0 0
    %19 = vperm.xlu0 %18, %v17
    %v20 = vpop.permute.xlu0 %19
    %vm21 = vcmp.eq.s32.totalorder %v20, %v16
    %v22 = vsel %vm21, 1, 0
    %v23 = vcvt.s32.f32 %v22
    %vm24 = vcmask 195584
    %v26 = vsel %vm24, %v23, 0
    %28 = vmatprep.subr.mxu0 0.0
    %29 = vmatpush1.msra.mxu0 0.0
    %30 = vmatprep.subr.mxu0 0.0
    %31 = vmatpush1.msra.mxu0 0.0
    %32 = vmatprep.subr.mxu0 0.0
    %33 = vmatpush1.msra.mxu0 0.0
    %34 = vmatprep.subr.mxu0 0.0
    %35 = vmatpush1.msra.mxu0 0.0
    %36 = vmatprep.subr.mxu0 0.0
    %37 = vmatpush1.msra.mxu0 0.0
    %38 = vmatprep.subr.mxu0 0.0
    %39 = vmatpush1.msra.mxu0 0.0
    %40 = vmatprep.subr.mxu0 0.0
    %41 = vmatpush1.msra.mxu0 0.0
    %42 = vmatprep.subr.mxu0 0.0
    %43 = vmatpush1.msra.mxu0 0.0
    %44 = vmatprep.subr.mxu0 0.0
    %45 = vmatpush1.msra.mxu0 0.0
    %46 = vmatprep.subr.mxu0 0.0
    %47 = vmatpush1.msra.mxu0 0.0
    %48 = vmatprep.subr.mxu0 0.0
    %49 = vmatpush1.msra.mxu0 0.0
    %50 = vmatprep.subr.mxu0 0.0
    %51 = vmatpush1.msra.mxu0 0.0
    %52 = vmatprep.subr.mxu0 0.0
    %53 = vmatpush1.msra.mxu0 0.0
    %54 = vmatprep.subr.mxu0 0.0
    %v55 = vand.u32 %v14, 4294901760
    %56 = vmatpush1.msra.mxu0 %v55
    %57 = vmatprep.subr.mxu0 0.0
    %v58 = vand.u32 %v13, 4294901760
    %59 = vmatpush1.msra.mxu0 %v58
    %60 = vmatprep.subr.mxu0 0.0
    %v61 = vand.u32 %v12, 4294901760
    %62 = vmatpush1.msra.mxu0 %v61
    %63 = vmatprep.subr.mxu0 0.0
    %64 = vmatpush2.msra.mxu0 0.0
    %65 = vmatprep.subr.mxu0 0.0
    %66 = vmatpush2.msra.mxu0 0.0
    %67 = vmatprep.subr.mxu0 0.0
    %68 = vmatpush2.msra.mxu0 0.0
    %69 = vmatprep.subr.mxu0 0.0
    %70 = vmatpush2.msra.mxu0 0.0
    %71 = vmatprep.subr.mxu0 0.0
    %72 = vmatpush2.msra.mxu0 0.0
    %73 = vmatprep.subr.mxu0 0.0
    %74 = vmatpush2.msra.mxu0 0.0
    %75 = vmatprep.subr.mxu0 0.0
    %76 = vmatpush2.msra.mxu0 0.0
    %77 = vmatprep.subr.mxu0 0.0
    %78 = vmatpush2.msra.mxu0 0.0
    %79 = vmatprep.subr.mxu0 0.0
    %80 = vmatpush2.msra.mxu0 0.0
    %81 = vmatprep.subr.mxu0 0.0
    %82 = vmatpush2.msra.mxu0 0.0
    %83 = vmatprep.subr.mxu0 0.0
    %84 = vmatpush2.msra.mxu0 0.0
    %85 = vmatprep.subr.mxu0 0.0
    %86 = vmatpush2.msra.mxu0 0.0
    %87 = vmatprep.subr.mxu0 0.0
    %88 = vmatpush2.msra.mxu0 0.0
    %89 = vmatprep.subr.mxu0 0.0
    %90 = vmatpush2.msra.mxu0 0.0
    %91 = vmatprep.subr.mxu0 0.0
    %92 = vmatpush2.msra.mxu0 0.0
    %93 = vmatprep.subr.mxu0 0.0
    %94 = vmatpush2.msra.mxu0 0.0
    %95 = vmatprep.mubr.f32.mxu0 0.0
    %v96 = vand.u32 %v26, 4294901760
    %v97 = vsub.f32 %v26, %v96
    %v98 = vand.u32 %v97, 4294901760
    %v99 = vsub.f32 %v97, %v98
    %v100 = vand.u32 %v99, 4294901760
    %101 = vmatmul.mubr.f32.gmra.mxu0 %v100
    %v102 = vpop.f32.mrf.mxu0
    %v103 = vadd.f32 0.0, %v102
    %v104 = vpop.f32.mrf.mxu0
    %105 = vdwg.mxu0
    %106 = vmatprep.subr.mxu0 0.0
    %107 = vmatpush1.msra.mxu0 0.0
    %108 = vmatprep.subr.mxu0 0.0
    %109 = vmatpush1.msra.mxu0 0.0
    %110 = vmatprep.subr.mxu0 0.0
    %111 = vmatpush1.msra.mxu0 0.0
    %112 = vmatprep.subr.mxu0 0.0
    %113 = vmatpush1.msra.mxu0 0.0
    %114 = vmatprep.subr.mxu0 0.0
    %115 = vmatpush1.msra.mxu0 0.0
    %116 = vmatprep.subr.mxu0 0.0
    %117 = vmatpush1.msra.mxu0 0.0
    %118 = vmatprep.subr.mxu0 0.0
    %119 = vmatpush1.msra.mxu0 0.0
    %120 = vmatprep.subr.mxu0 0.0
    %121 = vmatpush1.msra.mxu0 0.0
    %122 = vmatprep.subr.mxu0 0.0
    %123 = vmatpush1.msra.mxu0 0.0
    %124 = vmatprep.subr.mxu0 0.0
    %125 = vmatpush1.msra.mxu0 0.0
    %126 = vmatprep.subr.mxu0 0.0
    %127 = vmatpush1.msra.mxu0 0.0
    %128 = vmatprep.subr.mxu0 0.0
    %129 = vmatpush1.msra.mxu0 0.0
    %130 = vmatprep.subr.mxu0 0.0
    %131 = vmatpush1.msra.mxu0 0.0
    %132 = vmatprep.subr.mxu0 0.0
    %v133 = vand.u32 %v14, 4294901760
    %v134 = vsub.f32 %v14, %v133
    %v135 = vand.u32 %v134, 4294901760
    %v136 = vsub.f32 %v134, %v135
    %v137 = vand.u32 %v136, 4294901760
    %138 = vmatpush1.msra.mxu0 %v137
    %139 = vmatprep.subr.mxu0 0.0
    %v140 = vand.u32 %v13, 4294901760
    %v141 = vsub.f32 %v13, %v140
    %v142 = vand.u32 %v141, 4294901760
    %v143 = vsub.f32 %v141, %v142
    %v144 = vand.u32 %v143, 4294901760
    %145 = vmatpush1.msra.mxu0 %v144
    %146 = vmatprep.subr.mxu0 0.0
    %v147 = vand.u32 %v12, 4294901760
    %v148 = vsub.f32 %v12, %v147
    %v149 = vand.u32 %v148, 4294901760
    %v150 = vsub.f32 %v148, %v149
    %v151 = vand.u32 %v150, 4294901760
    %152 = vmatpush1.msra.mxu0 %v151
    %153 = vmatprep.subr.mxu0 0.0
    %154 = vmatpush2.msra.mxu0 0.0
    %155 = vmatprep.subr.mxu0 0.0
    %156 = vmatpush2.msra.mxu0 0.0
    %157 = vmatprep.subr.mxu0 0.0
    %158 = vmatpush2.msra.mxu0 0.0
    %159 = vmatprep.subr.mxu0 0.0
    %160 = vmatpush2.msra.mxu0 0.0
    %161 = vmatprep.subr.mxu0 0.0
    %162 = vmatpush2.msra.mxu0 0.0
    %163 = vmatprep.subr.mxu0 0.0
    %164 = vmatpush2.msra.mxu0 0.0
    %165 = vmatprep.subr.mxu0 0.0
    %166 = vmatpush2.msra.mxu0 0.0
    %167 = vmatprep.subr.mxu0 0.0
    %168 = vmatpush2.msra.mxu0 0.0
    %169 = vmatprep.subr.mxu0 0.0
    %170 = vmatpush2.msra.mxu0 0.0
    %171 = vmatprep.subr.mxu0 0.0
    %172 = vmatpush2.msra.mxu0 0.0
    %173 = vmatprep.subr.mxu0 0.0
    %174 = vmatpush2.msra.mxu0 0.0
    %175 = vmatprep.subr.mxu0 0.0
    %176 = vmatpush2.msra.mxu0 0.0
    %177 = vmatprep.subr.mxu0 0.0
    %178 = vmatpush2.msra.mxu0 0.0
    %179 = vmatprep.subr.mxu0 0.0
    %180 = vmatpush2.msra.mxu0 0.0
    %181 = vmatprep.subr.mxu0 0.0
    %182 = vmatpush2.msra.mxu0 0.0
    %183 = vmatprep.subr.mxu0 0.0
    %184 = vmatpush2.msra.mxu0 0.0
    %185 = vmatprep.mubr.f32.mxu0 0.0
    %v186 = vand.u32 %v26, 4294901760
    %187 = vmatmul.mubr.f32.gmra.mxu0 %v186
    %v188 = vpop.f32.mrf.mxu0
    %v189 = vadd.f32 %v103, %v188
    %v190 = vpop.f32.mrf.mxu0
    %191 = vdwg.mxu0
    %192 = vmatprep.subr.mxu0 0.0
    %193 = vmatpush1.msra.mxu0 0.0
    %194 = vmatprep.subr.mxu0 0.0
    %195 = vmatpush1.msra.mxu0 0.0
    %196 = vmatprep.subr.mxu0 0.0
    %197 = vmatpush1.msra.mxu0 0.0
    %198 = vmatprep.subr.mxu0 0.0
    %199 = vmatpush1.msra.mxu0 0.0
    %200 = vmatprep.subr.mxu0 0.0
    %201 = vmatpush1.msra.mxu0 0.0
    %202 = vmatprep.subr.mxu0 0.0
    %203 = vmatpush1.msra.mxu0 0.0
    %204 = vmatprep.subr.mxu0 0.0
    %205 = vmatpush1.msra.mxu0 0.0
    %206 = vmatprep.subr.mxu0 0.0
    %207 = vmatpush1.msra.mxu0 0.0
    %208 = vmatprep.subr.mxu0 0.0
    %209 = vmatpush1.msra.mxu0 0.0
    %210 = vmatprep.subr.mxu0 0.0
    %211 = vmatpush1.msra.mxu0 0.0
    %212 = vmatprep.subr.mxu0 0.0
    %213 = vmatpush1.msra.mxu0 0.0
    %214 = vmatprep.subr.mxu0 0.0
    %215 = vmatpush1.msra.mxu0 0.0
    %216 = vmatprep.subr.mxu0 0.0
    %217 = vmatpush1.msra.mxu0 0.0
    %218 = vmatprep.subr.mxu0 0.0
    %v219 = vand.u32 %v14, 4294901760
    %v220 = vsub.f32 %v14, %v219
    %221 = vmatpush1.msra.mxu0 %v220
    %222 = vmatprep.subr.mxu0 0.0
    %v223 = vand.u32 %v13, 4294901760
    %v224 = vsub.f32 %v13, %v223
    %225 = vmatpush1.msra.mxu0 %v224
    %226 = vmatprep.subr.mxu0 0.0
    %v227 = vand.u32 %v12, 4294901760
    %v228 = vsub.f32 %v12, %v227
    %229 = vmatpush1.msra.mxu0 %v228
    %230 = vmatprep.subr.mxu0 0.0
    %231 = vmatpush2.msra.mxu0 0.0
    %232 = vmatprep.subr.mxu0 0.0
    %233 = vmatpush2.msra.mxu0 0.0
    %234 = vmatprep.subr.mxu0 0.0
    %235 = vmatpush2.msra.mxu0 0.0
    %236 = vmatprep.subr.mxu0 0.0
    %237 = vmatpush2.msra.mxu0 0.0
    %238 = vmatprep.subr.mxu0 0.0
    %239 = vmatpush2.msra.mxu0 0.0
    %240 = vmatprep.subr.mxu0 0.0
    %241 = vmatpush2.msra.mxu0 0.0
    %242 = vmatprep.subr.mxu0 0.0
    %243 = vmatpush2.msra.mxu0 0.0
    %244 = vmatprep.subr.mxu0 0.0
    %245 = vmatpush2.msra.mxu0 0.0
    %246 = vmatprep.subr.mxu0 0.0
    %247 = vmatpush2.msra.mxu0 0.0
    %248 = vmatprep.subr.mxu0 0.0
    %249 = vmatpush2.msra.mxu0 0.0
    %250 = vmatprep.subr.mxu0 0.0
    %251 = vmatpush2.msra.mxu0 0.0
    %252 = vmatprep.subr.mxu0 0.0
    %253 = vmatpush2.msra.mxu0 0.0
    %254 = vmatprep.subr.mxu0 0.0
    %255 = vmatpush2.msra.mxu0 0.0
    %256 = vmatprep.subr.mxu0 0.0
    %257 = vmatpush2.msra.mxu0 0.0
    %258 = vmatprep.subr.mxu0 0.0
    %259 = vmatpush2.msra.mxu0 0.0
    %260 = vmatprep.subr.mxu0 0.0
    %261 = vmatpush2.msra.mxu0 0.0
    %262 = vmatprep.mubr.f32.mxu0 0.0
    %v263 = vand.u32 %v26, 4294901760
    %v264 = vsub.f32 %v26, %v263
    %265 = vmatmul.mubr.f32.gmra.mxu0 %v264
    %v266 = vpop.f32.mrf.mxu0
    %v267 = vadd.f32 %v189, %v266
    %v268 = vpop.f32.mrf.mxu0
    %269 = vdwg.mxu0
    %270 = vmatprep.subr.mxu0 0.0
    %271 = vmatpush1.msra.mxu0 0.0
    %272 = vmatprep.subr.mxu0 0.0
    %273 = vmatpush1.msra.mxu0 0.0
    %274 = vmatprep.subr.mxu0 0.0
    %275 = vmatpush1.msra.mxu0 0.0
    %276 = vmatprep.subr.mxu0 0.0
    %277 = vmatpush1.msra.mxu0 0.0
    %278 = vmatprep.subr.mxu0 0.0
    %279 = vmatpush1.msra.mxu0 0.0
    %280 = vmatprep.subr.mxu0 0.0
    %281 = vmatpush1.msra.mxu0 0.0
    %282 = vmatprep.subr.mxu0 0.0
    %283 = vmatpush1.msra.mxu0 0.0
    %284 = vmatprep.subr.mxu0 0.0
    %285 = vmatpush1.msra.mxu0 0.0
    %286 = vmatprep.subr.mxu0 0.0
    %287 = vmatpush1.msra.mxu0 0.0
    %288 = vmatprep.subr.mxu0 0.0
    %289 = vmatpush1.msra.mxu0 0.0
    %290 = vmatprep.subr.mxu0 0.0
    %291 = vmatpush1.msra.mxu0 0.0
    %292 = vmatprep.subr.mxu0 0.0
    %293 = vmatpush1.msra.mxu0 0.0
    %294 = vmatprep.subr.mxu0 0.0
    %295 = vmatpush1.msra.mxu0 0.0
    %296 = vmatprep.subr.mxu0 0.0
    %v297 = vand.u32 %v14, 4294901760
    %298 = vmatpush1.msra.mxu0 %v297
    %299 = vmatprep.subr.mxu0 0.0
    %v300 = vand.u32 %v13, 4294901760
    %301 = vmatpush1.msra.mxu0 %v300
    %302 = vmatprep.subr.mxu0 0.0
    %v303 = vand.u32 %v12, 4294901760
    %304 = vmatpush1.msra.mxu0 %v303
    %305 = vmatprep.subr.mxu0 0.0
    %306 = vmatpush2.msra.mxu0 0.0
    %307 = vmatprep.subr.mxu0 0.0
    %308 = vmatpush2.msra.mxu0 0.0
    %309 = vmatprep.subr.mxu0 0.0
    %310 = vmatpush2.msra.mxu0 0.0
    %311 = vmatprep.subr.mxu0 0.0
    %312 = vmatpush2.msra.mxu0 0.0
    %313 = vmatprep.subr.mxu0 0.0
    %314 = vmatpush2.msra.mxu0 0.0
    %315 = vmatprep.subr.mxu0 0.0
    %316 = vmatpush2.msra.mxu0 0.0
    %317 = vmatprep.subr.mxu0 0.0
    %318 = vmatpush2.msra.mxu0 0.0
    %319 = vmatprep.subr.mxu0 0.0
    %320 = vmatpush2.msra.mxu0 0.0
    %321 = vmatprep.subr.mxu0 0.0
    %322 = vmatpush2.msra.mxu0 0.0
    %323 = vmatprep.subr.mxu0 0.0
    %324 = vmatpush2.msra.mxu0 0.0
    %325 = vmatprep.subr.mxu0 0.0
    %326 = vmatpush2.msra.mxu0 0.0
    %327 = vmatprep.subr.mxu0 0.0
    %328 = vmatpush2.msra.mxu0 0.0
    %329 = vmatprep.subr.mxu0 0.0
    %330 = vmatpush2.msra.mxu0 0.0
    %331 = vmatprep.subr.mxu0 0.0
    %332 = vmatpush2.msra.mxu0 0.0
    %333 = vmatprep.subr.mxu0 0.0
    %334 = vmatpush2.msra.mxu0 0.0
    %335 = vmatprep.subr.mxu0 0.0
    %336 = vmatpush2.msra.mxu0 0.0
    %337 = vmatprep.mubr.f32.mxu0 0.0
    %v338 = vand.u32 %v26, 4294901760
    %v339 = vsub.f32 %v26, %v338
    %v340 = vand.u32 %v339, 4294901760
    %341 = vmatmul.mubr.f32.gmra.mxu0 %v340
    %v342 = vpop.f32.mrf.mxu0
    %v343 = vadd.f32 %v267, %v342
    %v344 = vpop.f32.mrf.mxu0
    %345 = vdwg.mxu0
    %346 = vmatprep.subr.mxu0 0.0
    %347 = vmatpush1.msra.mxu0 0.0
    %348 = vmatprep.subr.mxu0 0.0
    %349 = vmatpush1.msra.mxu0 0.0
    %350 = vmatprep.subr.mxu0 0.0
    %351 = vmatpush1.msra.mxu0 0.0
    %352 = vmatprep.subr.mxu0 0.0
    %353 = vmatpush1.msra.mxu0 0.0
    %354 = vmatprep.subr.mxu0 0.0
    %355 = vmatpush1.msra.mxu0 0.0
    %356 = vmatprep.subr.mxu0 0.0
    %357 = vmatpush1.msra.mxu0 0.0
    %358 = vmatprep.subr.mxu0 0.0
    %359 = vmatpush1.msra.mxu0 0.0
    %360 = vmatprep.subr.mxu0 0.0
    %361 = vmatpush1.msra.mxu0 0.0
    %362 = vmatprep.subr.mxu0 0.0
    %363 = vmatpush1.msra.mxu0 0.0
    %364 = vmatprep.subr.mxu0 0.0
    %365 = vmatpush1.msra.mxu0 0.0
    %366 = vmatprep.subr.mxu0 0.0
    %367 = vmatpush1.msra.mxu0 0.0
    %368 = vmatprep.subr.mxu0 0.0
    %369 = vmatpush1.msra.mxu0 0.0
    %370 = vmatprep.subr.mxu0 0.0
    %371 = vmatpush1.msra.mxu0 0.0
    %372 = vmatprep.subr.mxu0 0.0
    %v373 = vand.u32 %v14, 4294901760
    %v374 = vsub.f32 %v14, %v373
    %v375 = vand.u32 %v374, 4294901760
    %376 = vmatpush1.msra.mxu0 %v375
    %377 = vmatprep.subr.mxu0 0.0
    %v378 = vand.u32 %v13, 4294901760
    %v379 = vsub.f32 %v13, %v378
    %v380 = vand.u32 %v379, 4294901760
    %381 = vmatpush1.msra.mxu0 %v380
    %382 = vmatprep.subr.mxu0 0.0
    %v383 = vand.u32 %v12, 4294901760
    %v384 = vsub.f32 %v12, %v383
    %v385 = vand.u32 %v384, 4294901760
    %386 = vmatpush1.msra.mxu0 %v385
    %387 = vmatprep.subr.mxu0 0.0
    %388 = vmatpush2.msra.mxu0 0.0
    %389 = vmatprep.subr.mxu0 0.0
    %390 = vmatpush2.msra.mxu0 0.0
    %391 = vmatprep.subr.mxu0 0.0
    %392 = vmatpush2.msra.mxu0 0.0
    %393 = vmatprep.subr.mxu0 0.0
    %394 = vmatpush2.msra.mxu0 0.0
    %395 = vmatprep.subr.mxu0 0.0
    %396 = vmatpush2.msra.mxu0 0.0
    %397 = vmatprep.subr.mxu0 0.0
    %398 = vmatpush2.msra.mxu0 0.0
    %399 = vmatprep.subr.mxu0 0.0
    %400 = vmatpush2.msra.mxu0 0.0
    %401 = vmatprep.subr.mxu0 0.0
    %402 = vmatpush2.msra.mxu0 0.0
    %403 = vmatprep.subr.mxu0 0.0
    %404 = vmatpush2.msra.mxu0 0.0
    %405 = vmatprep.subr.mxu0 0.0
    %406 = vmatpush2.msra.mxu0 0.0
    %407 = vmatprep.subr.mxu0 0.0
    %408 = vmatpush2.msra.mxu0 0.0
    %409 = vmatprep.subr.mxu0 0.0
    %410 = vmatpush2.msra.mxu0 0.0
    %411 = vmatprep.subr.mxu0 0.0
    %412 = vmatpush2.msra.mxu0 0.0
    %413 = vmatprep.subr.mxu0 0.0
    %414 = vmatpush2.msra.mxu0 0.0
    %415 = vmatprep.subr.mxu0 0.0
    %416 = vmatpush2.msra.mxu0 0.0
    %417 = vmatprep.subr.mxu0 0.0
    %418 = vmatpush2.msra.mxu0 0.0
    %419 = vmatprep.mubr.f32.mxu0 0.0
    %v420 = vand.u32 %v26, 4294901760
    %421 = vmatmul.mubr.f32.gmra.mxu0 %v420
    %v422 = vpop.f32.mrf.mxu0
    %v423 = vadd.f32 %v343, %v422
    %v424 = vpop.f32.mrf.mxu0
    %425 = vdwg.mxu0
    %426 = vmatprep.subr.mxu0 0.0
    %427 = vmatpush1.msra.mxu0 0.0
    %428 = vmatprep.subr.mxu0 0.0
    %429 = vmatpush1.msra.mxu0 0.0
    %430 = vmatprep.subr.mxu0 0.0
    %431 = vmatpush1.msra.mxu0 0.0
    %432 = vmatprep.subr.mxu0 0.0
    %433 = vmatpush1.msra.mxu0 0.0
    %434 = vmatprep.subr.mxu0 0.0
    %435 = vmatpush1.msra.mxu0 0.0
    %436 = vmatprep.subr.mxu0 0.0
    %437 = vmatpush1.msra.mxu0 0.0
    %438 = vmatprep.subr.mxu0 0.0
    %439 = vmatpush1.msra.mxu0 0.0
    %440 = vmatprep.subr.mxu0 0.0
    %441 = vmatpush1.msra.mxu0 0.0
    %442 = vmatprep.subr.mxu0 0.0
    %443 = vmatpush1.msra.mxu0 0.0
    %444 = vmatprep.subr.mxu0 0.0
    %445 = vmatpush1.msra.mxu0 0.0
    %446 = vmatprep.subr.mxu0 0.0
    %447 = vmatpush1.msra.mxu0 0.0
    %448 = vmatprep.subr.mxu0 0.0
    %449 = vmatpush1.msra.mxu0 0.0
    %450 = vmatprep.subr.mxu0 0.0
    %451 = vmatpush1.msra.mxu0 0.0
    %452 = vmatprep.subr.mxu0 0.0
    %v453 = vand.u32 %v14, 4294901760
    %454 = vmatpush1.msra.mxu0 %v453
    %455 = vmatprep.subr.mxu0 0.0
    %v456 = vand.u32 %v13, 4294901760
    %457 = vmatpush1.msra.mxu0 %v456
    %458 = vmatprep.subr.mxu0 0.0
    %v459 = vand.u32 %v12, 4294901760
    %460 = vmatpush1.msra.mxu0 %v459
    %461 = vmatprep.subr.mxu0 0.0
    %462 = vmatpush2.msra.mxu0 0.0
    %463 = vmatprep.subr.mxu0 0.0
    %464 = vmatpush2.msra.mxu0 0.0
    %465 = vmatprep.subr.mxu0 0.0
    %466 = vmatpush2.msra.mxu0 0.0
    %467 = vmatprep.subr.mxu0 0.0
    %468 = vmatpush2.msra.mxu0 0.0
    %469 = vmatprep.subr.mxu0 0.0
    %470 = vmatpush2.msra.mxu0 0.0
    %471 = vmatprep.subr.mxu0 0.0
    %472 = vmatpush2.msra.mxu0 0.0
    %473 = vmatprep.subr.mxu0 0.0
    %474 = vmatpush2.msra.mxu0 0.0
    %475 = vmatprep.subr.mxu0 0.0
    %476 = vmatpush2.msra.mxu0 0.0
    %477 = vmatprep.subr.mxu0 0.0
    %478 = vmatpush2.msra.mxu0 0.0
    %479 = vmatprep.subr.mxu0 0.0
    %480 = vmatpush2.msra.mxu0 0.0
    %481 = vmatprep.subr.mxu0 0.0
    %482 = vmatpush2.msra.mxu0 0.0
    %483 = vmatprep.subr.mxu0 0.0
    %484 = vmatpush2.msra.mxu0 0.0
    %485 = vmatprep.subr.mxu0 0.0
    %486 = vmatpush2.msra.mxu0 0.0
    %487 = vmatprep.subr.mxu0 0.0
    %488 = vmatpush2.msra.mxu0 0.0
    %489 = vmatprep.subr.mxu0 0.0
    %490 = vmatpush2.msra.mxu0 0.0
    %491 = vmatprep.subr.mxu0 0.0
    %492 = vmatpush2.msra.mxu0 0.0
    %493 = vmatprep.mubr.f32.mxu0 0.0
    %v494 = vand.u32 %v26, 4294901760
    %495 = vmatmul.mubr.f32.gmra.mxu0 %v494
    %v496 = vpop.f32.mrf.mxu0
    %v497 = vadd.f32 %v423, %v496
    %v498 = vpop.f32.mrf.mxu0
    %499 = vdwg.mxu0
    %vm500 = vcmask 261120
    %501 = vst.msk [vmem:[#allocation2] sm:$0xff] %vm500, %v497
    %v502 = vld [vmem:[%s0 + $0x8] sm:$0xff]
    %503 = vset.pattern.permute.xlu0 0
    %504 = vperm.xlu0 %503, %v502
    %v505 = vpop.permute.xlu0 %504
    %vm506 = vcmp.eq.s32.totalorder %v505, %v16
    %v507 = vsel %vm506, 1, 0
    %v508 = vcvt.s32.f32 %v507
    %v510 = vsel %vm24, %v508, 0
    %512 = vmatprep.subr.mxu0 0.0
    %513 = vmatpush1.msra.mxu0 0.0
    %514 = vmatprep.subr.mxu0 0.0
    %515 = vmatpush1.msra.mxu0 0.0
    %516 = vmatprep.subr.mxu0 0.0
    %517 = vmatpush1.msra.mxu0 0.0
    %518 = vmatprep.subr.mxu0 0.0
    %519 = vmatpush1.msra.mxu0 0.0
    %520 = vmatprep.subr.mxu0 0.0
    %521 = vmatpush1.msra.mxu0 0.0
    %522 = vmatprep.subr.mxu0 0.0
    %523 = vmatpush1.msra.mxu0 0.0
    %524 = vmatprep.subr.mxu0 0.0
    %525 = vmatpush1.msra.mxu0 0.0
    %526 = vmatprep.subr.mxu0 0.0
    %527 = vmatpush1.msra.mxu0 0.0
    %528 = vmatprep.subr.mxu0 0.0
    %529 = vmatpush1.msra.mxu0 0.0
    %530 = vmatprep.subr.mxu0 0.0
    %531 = vmatpush1.msra.mxu0 0.0
    %532 = vmatprep.subr.mxu0 0.0
    %533 = vmatpush1.msra.mxu0 0.0
    %534 = vmatprep.subr.mxu0 0.0
    %535 = vmatpush1.msra.mxu0 0.0
    %536 = vmatprep.subr.mxu0 0.0
    %537 = vmatpush1.msra.mxu0 0.0
    %538 = vmatprep.subr.mxu0 0.0
    %v539 = vand.u32 %v14, 4294901760
    %540 = vmatpush1.msra.mxu0 %v539
    %541 = vmatprep.subr.mxu0 0.0
    %v542 = vand.u32 %v13, 4294901760
    %543 = vmatpush1.msra.mxu0 %v542
    %544 = vmatprep.subr.mxu0 0.0
    %v545 = vand.u32 %v12, 4294901760
    %546 = vmatpush1.msra.mxu0 %v545
    %547 = vmatprep.subr.mxu0 0.0
    %548 = vmatpush2.msra.mxu0 0.0
    %549 = vmatprep.subr.mxu0 0.0
    %550 = vmatpush2.msra.mxu0 0.0
    %551 = vmatprep.subr.mxu0 0.0
    %552 = vmatpush2.msra.mxu0 0.0
    %553 = vmatprep.subr.mxu0 0.0
    %554 = vmatpush2.msra.mxu0 0.0
    %555 = vmatprep.subr.mxu0 0.0
    %556 = vmatpush2.msra.mxu0 0.0
    %557 = vmatprep.subr.mxu0 0.0
    %558 = vmatpush2.msra.mxu0 0.0
    %559 = vmatprep.subr.mxu0 0.0
    %560 = vmatpush2.msra.mxu0 0.0
    %561 = vmatprep.subr.mxu0 0.0
    %562 = vmatpush2.msra.mxu0 0.0
    %563 = vmatprep.subr.mxu0 0.0
    %564 = vmatpush2.msra.mxu0 0.0
    %565 = vmatprep.subr.mxu0 0.0
    %566 = vmatpush2.msra.mxu0 0.0
    %567 = vmatprep.subr.mxu0 0.0
    %568 = vmatpush2.msra.mxu0 0.0
    %569 = vmatprep.subr.mxu0 0.0
    %570 = vmatpush2.msra.mxu0 0.0
    %571 = vmatprep.subr.mxu0 0.0
    %572 = vmatpush2.msra.mxu0 0.0
    %573 = vmatprep.subr.mxu0 0.0
    %574 = vmatpush2.msra.mxu0 0.0
    %575 = vmatprep.subr.mxu0 0.0
    %576 = vmatpush2.msra.mxu0 0.0
    %577 = vmatprep.subr.mxu0 0.0
    %578 = vmatpush2.msra.mxu0 0.0
    %579 = vmatprep.mubr.f32.mxu0 0.0
    %v580 = vand.u32 %v510, 4294901760
    %v581 = vsub.f32 %v510, %v580
    %v582 = vand.u32 %v581, 4294901760
    %v583 = vsub.f32 %v581, %v582
    %v584 = vand.u32 %v583, 4294901760
    %585 = vmatmul.mubr.f32.gmra.mxu0 %v584
    %v586 = vpop.f32.mrf.mxu0
    %v587 = vadd.f32 0.0, %v586
    %v588 = vpop.f32.mrf.mxu0
    %589 = vdwg.mxu0
    %590 = vmatprep.subr.mxu0 0.0
    %591 = vmatpush1.msra.mxu0 0.0
    %592 = vmatprep.subr.mxu0 0.0
    %593 = vmatpush1.msra.mxu0 0.0
    %594 = vmatprep.subr.mxu0 0.0
    %595 = vmatpush1.msra.mxu0 0.0
    %596 = vmatprep.subr.mxu0 0.0
    %597 = vmatpush1.msra.mxu0 0.0
    %598 = vmatprep.subr.mxu0 0.0
    %599 = vmatpush1.msra.mxu0 0.0
    %600 = vmatprep.subr.mxu0 0.0
    %601 = vmatpush1.msra.mxu0 0.0
    %602 = vmatprep.subr.mxu0 0.0
    %603 = vmatpush1.msra.mxu0 0.0
    %604 = vmatprep.subr.mxu0 0.0
    %605 = vmatpush1.msra.mxu0 0.0
    %606 = vmatprep.subr.mxu0 0.0
    %607 = vmatpush1.msra.mxu0 0.0
    %608 = vmatprep.subr.mxu0 0.0
    %609 = vmatpush1.msra.mxu0 0.0
    %610 = vmatprep.subr.mxu0 0.0
    %611 = vmatpush1.msra.mxu0 0.0
    %612 = vmatprep.subr.mxu0 0.0
    %613 = vmatpush1.msra.mxu0 0.0
    %614 = vmatprep.subr.mxu0 0.0
    %615 = vmatpush1.msra.mxu0 0.0
    %616 = vmatprep.subr.mxu0 0.0
    %v617 = vand.u32 %v14, 4294901760
    %v618 = vsub.f32 %v14, %v617
    %v619 = vand.u32 %v618, 4294901760
    %v620 = vsub.f32 %v618, %v619
    %v621 = vand.u32 %v620, 4294901760
    %622 = vmatpush1.msra.mxu0 %v621
    %623 = vmatprep.subr.mxu0 0.0
    %v624 = vand.u32 %v13, 4294901760
    %v625 = vsub.f32 %v13, %v624
    %v626 = vand.u32 %v625, 4294901760
    %v627 = vsub.f32 %v625, %v626
    %v628 = vand.u32 %v627, 4294901760
    %629 = vmatpush1.msra.mxu0 %v628
    %630 = vmatprep.subr.mxu0 0.0
    %v631 = vand.u32 %v12, 4294901760
    %v632 = vsub.f32 %v12, %v631
    %v633 = vand.u32 %v632, 4294901760
    %v634 = vsub.f32 %v632, %v633
    %v635 = vand.u32 %v634, 4294901760
    %636 = vmatpush1.msra.mxu0 %v635
    %637 = vmatprep.subr.mxu0 0.0
    %638 = vmatpush2.msra.mxu0 0.0
    %639 = vmatprep.subr.mxu0 0.0
    %640 = vmatpush2.msra.mxu0 0.0
    %641 = vmatprep.subr.mxu0 0.0
    %642 = vmatpush2.msra.mxu0 0.0
    %643 = vmatprep.subr.mxu0 0.0
    %644 = vmatpush2.msra.mxu0 0.0
    %645 = vmatprep.subr.mxu0 0.0
    %646 = vmatpush2.msra.mxu0 0.0
    %647 = vmatprep.subr.mxu0 0.0
    %648 = vmatpush2.msra.mxu0 0.0
    %649 = vmatprep.subr.mxu0 0.0
    %650 = vmatpush2.msra.mxu0 0.0
    %651 = vmatprep.subr.mxu0 0.0
    %652 = vmatpush2.msra.mxu0 0.0
    %653 = vmatprep.subr.mxu0 0.0
    %654 = vmatpush2.msra.mxu0 0.0
    %655 = vmatprep.subr.mxu0 0.0
    %656 = vmatpush2.msra.mxu0 0.0
    %657 = vmatprep.subr.mxu0 0.0
    %658 = vmatpush2.msra.mxu0 0.0
    %659 = vmatprep.subr.mxu0 0.0
    %660 = vmatpush2.msra.mxu0 0.0
    %661 = vmatprep.subr.mxu0 0.0
    %662 = vmatpush2.msra.mxu0 0.0
    %663 = vmatprep.subr.mxu0 0.0
    %664 = vmatpush2.msra.mxu0 0.0
    %665 = vmatprep.subr.mxu0 0.0
    %666 = vmatpush2.msra.mxu0 0.0
    %667 = vmatprep.subr.mxu0 0.0
    %668 = vmatpush2.msra.mxu0 0.0
    %669 = vmatprep.mubr.f32.mxu0 0.0
    %v670 = vand.u32 %v510, 4294901760
    %671 = vmatmul.mubr.f32.gmra.mxu0 %v670
    %v672 = vpop.f32.mrf.mxu0
    %v673 = vadd.f32 %v587, %v672
    %v674 = vpop.f32.mrf.mxu0
    %675 = vdwg.mxu0
    %676 = vmatprep.subr.mxu0 0.0
    %677 = vmatpush1.msra.mxu0 0.0
    %678 = vmatprep.subr.mxu0 0.0
    %679 = vmatpush1.msra.mxu0 0.0
    %680 = vmatprep.subr.mxu0 0.0
    %681 = vmatpush1.msra.mxu0 0.0
    %682 = vmatprep.subr.mxu0 0.0
    %683 = vmatpush1.msra.mxu0 0.0
    %684 = vmatprep.subr.mxu0 0.0
    %685 = vmatpush1.msra.mxu0 0.0
    %686 = vmatprep.subr.mxu0 0.0
    %687 = vmatpush1.msra.mxu0 0.0
    %688 = vmatprep.subr.mxu0 0.0
    %689 = vmatpush1.msra.mxu0 0.0
    %690 = vmatprep.subr.mxu0 0.0
    %691 = vmatpush1.msra.mxu0 0.0
    %692 = vmatprep.subr.mxu0 0.0
    %693 = vmatpush1.msra.mxu0 0.0
    %694 = vmatprep.subr.mxu0 0.0
    %695 = vmatpush1.msra.mxu0 0.0
    %696 = vmatprep.subr.mxu0 0.0
    %697 = vmatpush1.msra.mxu0 0.0
    %698 = vmatprep.subr.mxu0 0.0
    %699 = vmatpush1.msra.mxu0 0.0
    %700 = vmatprep.subr.mxu0 0.0
    %701 = vmatpush1.msra.mxu0 0.0
    %702 = vmatprep.subr.mxu0 0.0
    %v703 = vand.u32 %v14, 4294901760
    %v704 = vsub.f32 %v14, %v703
    %705 = vmatpush1.msra.mxu0 %v704
    %706 = vmatprep.subr.mxu0 0.0
    %v707 = vand.u32 %v13, 4294901760
    %v708 = vsub.f32 %v13, %v707
    %709 = vmatpush1.msra.mxu0 %v708
    %710 = vmatprep.subr.mxu0 0.0
    %v711 = vand.u32 %v12, 4294901760
    %v712 = vsub.f32 %v12, %v711
    %713 = vmatpush1.msra.mxu0 %v712
    %714 = vmatprep.subr.mxu0 0.0
    %715 = vmatpush2.msra.mxu0 0.0
    %716 = vmatprep.subr.mxu0 0.0
    %717 = vmatpush2.msra.mxu0 0.0
    %718 = vmatprep.subr.mxu0 0.0
    %719 = vmatpush2.msra.mxu0 0.0
    %720 = vmatprep.subr.mxu0 0.0
    %721 = vmatpush2.msra.mxu0 0.0
    %722 = vmatprep.subr.mxu0 0.0
    %723 = vmatpush2.msra.mxu0 0.0
    %724 = vmatprep.subr.mxu0 0.0
    %725 = vmatpush2.msra.mxu0 0.0
    %726 = vmatprep.subr.mxu0 0.0
    %727 = vmatpush2.msra.mxu0 0.0
    %728 = vmatprep.subr.mxu0 0.0
    %729 = vmatpush2.msra.mxu0 0.0
    %730 = vmatprep.subr.mxu0 0.0
    %731 = vmatpush2.msra.mxu0 0.0
    %732 = vmatprep.subr.mxu0 0.0
    %733 = vmatpush2.msra.mxu0 0.0
    %734 = vmatprep.subr.mxu0 0.0
    %735 = vmatpush2.msra.mxu0 0.0
    %736 = vmatprep.subr.mxu0 0.0
    %737 = vmatpush2.msra.mxu0 0.0
    %738 = vmatprep.subr.mxu0 0.0
    %739 = vmatpush2.msra.mxu0 0.0
    %740 = vmatprep.subr.mxu0 0.0
    %741 = vmatpush2.msra.mxu0 0.0
    %742 = vmatprep.subr.mxu0 0.0
    %743 = vmatpush2.msra.mxu0 0.0
    %744 = vmatprep.subr.mxu0 0.0
    %745 = vmatpush2.msra.mxu0 0.0
    %746 = vmatprep.mubr.f32.mxu0 0.0
    %v747 = vand.u32 %v510, 4294901760
    %v748 = vsub.f32 %v510, %v747
    %749 = vmatmul.mubr.f32.gmra.mxu0 %v748
    %v750 = vpop.f32.mrf.mxu0
    %v751 = vadd.f32 %v673, %v750
    %v752 = vpop.f32.mrf.mxu0
    %753 = vdwg.mxu0
    %754 = vmatprep.subr.mxu0 0.0
    %755 = vmatpush1.msra.mxu0 0.0
    %756 = vmatprep.subr.mxu0 0.0
    %757 = vmatpush1.msra.mxu0 0.0
    %758 = vmatprep.subr.mxu0 0.0
    %759 = vmatpush1.msra.mxu0 0.0
    %760 = vmatprep.subr.mxu0 0.0
    %761 = vmatpush1.msra.mxu0 0.0
    %762 = vmatprep.subr.mxu0 0.0
    %763 = vmatpush1.msra.mxu0 0.0
    %764 = vmatprep.subr.mxu0 0.0
    %765 = vmatpush1.msra.mxu0 0.0
    %766 = vmatprep.subr.mxu0 0.0
    %767 = vmatpush1.msra.mxu0 0.0
    %768 = vmatprep.subr.mxu0 0.0
    %769 = vmatpush1.msra.mxu0 0.0
    %770 = vmatprep.subr.mxu0 0.0
    %771 = vmatpush1.msra.mxu0 0.0
    %772 = vmatprep.subr.mxu0 0.0
    %773 = vmatpush1.msra.mxu0 0.0
    %774 = vmatprep.subr.mxu0 0.0
    %775 = vmatpush1.msra.mxu0 0.0
    %776 = vmatprep.subr.mxu0 0.0
    %777 = vmatpush1.msra.mxu0 0.0
    %778 = vmatprep.subr.mxu0 0.0
    %779 = vmatpush1.msra.mxu0 0.0
    %780 = vmatprep.subr.mxu0 0.0
    %v781 = vand.u32 %v14, 4294901760
    %782 = vmatpush1.msra.mxu0 %v781
    %783 = vmatprep.subr.mxu0 0.0
    %v784 = vand.u32 %v13, 4294901760
    %785 = vmatpush1.msra.mxu0 %v784
    %786 = vmatprep.subr.mxu0 0.0
    %v787 = vand.u32 %v12, 4294901760
    %788 = vmatpush1.msra.mxu0 %v787
    %789 = vmatprep.subr.mxu0 0.0
    %790 = vmatpush2.msra.mxu0 0.0
    %791 = vmatprep.subr.mxu0 0.0
    %792 = vmatpush2.msra.mxu0 0.0
    %793 = vmatprep.subr.mxu0 0.0
    %794 = vmatpush2.msra.mxu0 0.0
    %795 = vmatprep.subr.mxu0 0.0
    %796 = vmatpush2.msra.mxu0 0.0
    %797 = vmatprep.subr.mxu0 0.0
    %798 = vmatpush2.msra.mxu0 0.0
    %799 = vmatprep.subr.mxu0 0.0
    %800 = vmatpush2.msra.mxu0 0.0
    %801 = vmatprep.subr.mxu0 0.0
    %802 = vmatpush2.msra.mxu0 0.0
    %803 = vmatprep.subr.mxu0 0.0
    %804 = vmatpush2.msra.mxu0 0.0
    %805 = vmatprep.subr.mxu0 0.0
    %806 = vmatpush2.msra.mxu0 0.0
    %807 = vmatprep.subr.mxu0 0.0
    %808 = vmatpush2.msra.mxu0 0.0
    %809 = vmatprep.subr.mxu0 0.0
    %810 = vmatpush2.msra.mxu0 0.0
    %811 = vmatprep.subr.mxu0 0.0
    %812 = vmatpush2.msra.mxu0 0.0
    %813 = vmatprep.subr.mxu0 0.0
    %814 = vmatpush2.msra.mxu0 0.0
    %815 = vmatprep.subr.mxu0 0.0
    %816 = vmatpush2.msra.mxu0 0.0
    %817 = vmatprep.subr.mxu0 0.0
    %818 = vmatpush2.msra.mxu0 0.0
    %819 = vmatprep.subr.mxu0 0.0
    %820 = vmatpush2.msra.mxu0 0.0
    %821 = vmatprep.mubr.f32.mxu0 0.0
    %v822 = vand.u32 %v510, 4294901760
    %v823 = vsub.f32 %v510, %v822
    %v824 = vand.u32 %v823, 4294901760
    %825 = vmatmul.mubr.f32.gmra.mxu0 %v824
    %v826 = vpop.f32.mrf.mxu0
    %v827 = vadd.f32 %v751, %v826
    %v828 = vpop.f32.mrf.mxu0
    %829 = vdwg.mxu0
    %830 = vmatprep.subr.mxu0 0.0
    %831 = vmatpush1.msra.mxu0 0.0
    %832 = vmatprep.subr.mxu0 0.0
    %833 = vmatpush1.msra.mxu0 0.0
    %834 = vmatprep.subr.mxu0 0.0
    %835 = vmatpush1.msra.mxu0 0.0
    %836 = vmatprep.subr.mxu0 0.0
    %837 = vmatpush1.msra.mxu0 0.0
    %838 = vmatprep.subr.mxu0 0.0
    %839 = vmatpush1.msra.mxu0 0.0
    %840 = vmatprep.subr.mxu0 0.0
    %841 = vmatpush1.msra.mxu0 0.0
    %842 = vmatprep.subr.mxu0 0.0
    %843 = vmatpush1.msra.mxu0 0.0
    %844 = vmatprep.subr.mxu0 0.0
    %845 = vmatpush1.msra.mxu0 0.0
    %846 = vmatprep.subr.mxu0 0.0
    %847 = vmatpush1.msra.mxu0 0.0
    %848 = vmatprep.subr.mxu0 0.0
    %849 = vmatpush1.msra.mxu0 0.0
    %850 = vmatprep.subr.mxu0 0.0
    %851 = vmatpush1.msra.mxu0 0.0
    %852 = vmatprep.subr.mxu0 0.0
    %853 = vmatpush1.msra.mxu0 0.0
    %854 = vmatprep.subr.mxu0 0.0
    %855 = vmatpush1.msra.mxu0 0.0
    %856 = vmatprep.subr.mxu0 0.0
    %v857 = vand.u32 %v14, 4294901760
    %v858 = vsub.f32 %v14, %v857
    %v859 = vand.u32 %v858, 4294901760
    %860 = vmatpush1.msra.mxu0 %v859
    %861 = vmatprep.subr.mxu0 0.0
    %v862 = vand.u32 %v13, 4294901760
    %v863 = vsub.f32 %v13, %v862
    %v864 = vand.u32 %v863, 4294901760
    %865 = vmatpush1.msra.mxu0 %v864
    %866 = vmatprep.subr.mxu0 0.0
    %v867 = vand.u32 %v12, 4294901760
    %v868 = vsub.f32 %v12, %v867
    %v869 = vand.u32 %v868, 4294901760
    %870 = vmatpush1.msra.mxu0 %v869
    %871 = vmatprep.subr.mxu0 0.0
    %872 = vmatpush2.msra.mxu0 0.0
    %873 = vmatprep.subr.mxu0 0.0
    %874 = vmatpush2.msra.mxu0 0.0
    %875 = vmatprep.subr.mxu0 0.0
    %876 = vmatpush2.msra.mxu0 0.0
    %877 = vmatprep.subr.mxu0 0.0
    %878 = vmatpush2.msra.mxu0 0.0
    %879 = vmatprep.subr.mxu0 0.0
    %880 = vmatpush2.msra.mxu0 0.0
    %881 = vmatprep.subr.mxu0 0.0
    %882 = vmatpush2.msra.mxu0 0.0
    %883 = vmatprep.subr.mxu0 0.0
    %884 = vmatpush2.msra.mxu0 0.0
    %885 = vmatprep.subr.mxu0 0.0
    %886 = vmatpush2.msra.mxu0 0.0
    %887 = vmatprep.subr.mxu0 0.0
    %888 = vmatpush2.msra.mxu0 0.0
    %889 = vmatprep.subr.mxu0 0.0
    %890 = vmatpush2.msra.mxu0 0.0
    %891 = vmatprep.subr.mxu0 0.0
    %892 = vmatpush2.msra.mxu0 0.0
    %893 = vmatprep.subr.mxu0 0.0
    %894 = vmatpush2.msra.mxu0 0.0
    %895 = vmatprep.subr.mxu0 0.0
    %896 = vmatpush2.msra.mxu0 0.0
    %897 = vmatprep.subr.mxu0 0.0
    %898 = vmatpush2.msra.mxu0 0.0
    %899 = vmatprep.subr.mxu0 0.0
    %900 = vmatpush2.msra.mxu0 0.0
    %901 = vmatprep.subr.mxu0 0.0
    %902 = vmatpush2.msra.mxu0 0.0
    %903 = vmatprep.mubr.f32.mxu0 0.0
    %v904 = vand.u32 %v510, 4294901760
    %905 = vmatmul.mubr.f32.gmra.mxu0 %v904
    %v906 = vpop.f32.mrf.mxu0
    %v907 = vadd.f32 %v827, %v906
    %v908 = vpop.f32.mrf.mxu0
    %909 = vdwg.mxu0
    %910 = vmatprep.subr.mxu0 0.0
    %911 = vmatpush1.msra.mxu0 0.0
    %912 = vmatprep.subr.mxu0 0.0
    %913 = vmatpush1.msra.mxu0 0.0
    %914 = vmatprep.subr.mxu0 0.0
    %915 = vmatpush1.msra.mxu0 0.0
    %916 = vmatprep.subr.mxu0 0.0
    %917 = vmatpush1.msra.mxu0 0.0
    %918 = vmatprep.subr.mxu0 0.0
    %919 = vmatpush1.msra.mxu0 0.0
    %920 = vmatprep.subr.mxu0 0.0
    %921 = vmatpush1.msra.mxu0 0.0
    %922 = vmatprep.subr.mxu0 0.0
    %923 = vmatpush1.msra.mxu0 0.0
    %924 = vmatprep.subr.mxu0 0.0
    %925 = vmatpush1.msra.mxu0 0.0
    %926 = vmatprep.subr.mxu0 0.0
    %927 = vmatpush1.msra.mxu0 0.0
    %928 = vmatprep.subr.mxu0 0.0
    %929 = vmatpush1.msra.mxu0 0.0
    %930 = vmatprep.subr.mxu0 0.0
    %931 = vmatpush1.msra.mxu0 0.0
    %932 = vmatprep.subr.mxu0 0.0
    %933 = vmatpush1.msra.mxu0 0.0
    %934 = vmatprep.subr.mxu0 0.0
    %935 = vmatpush1.msra.mxu0 0.0
    %936 = vmatprep.subr.mxu0 0.0
    %v937 = vand.u32 %v14, 4294901760
    %938 = vmatpush1.msra.mxu0 %v937
    %939 = vmatprep.subr.mxu0 0.0
    %v940 = vand.u32 %v13, 4294901760
    %941 = vmatpush1.msra.mxu0 %v940
    %942 = vmatprep.subr.mxu0 0.0
    %v943 = vand.u32 %v12, 4294901760
    %944 = vmatpush1.msra.mxu0 %v943
    %945 = vmatprep.subr.mxu0 0.0
    %946 = vmatpush2.msra.mxu0 0.0
    %947 = vmatprep.subr.mxu0 0.0
    %948 = vmatpush2.msra.mxu0 0.0
    %949 = vmatprep.subr.mxu0 0.0
    %950 = vmatpush2.msra.mxu0 0.0
    %951 = vmatprep.subr.mxu0 0.0
    %952 = vmatpush2.msra.mxu0 0.0
    %953 = vmatprep.subr.mxu0 0.0
    %954 = vmatpush2.msra.mxu0 0.0
    %955 = vmatprep.subr.mxu0 0.0
    %956 = vmatpush2.msra.mxu0 0.0
    %957 = vmatprep.subr.mxu0 0.0
    %958 = vmatpush2.msra.mxu0 0.0
    %959 = vmatprep.subr.mxu0 0.0
    %960 = vmatpush2.msra.mxu0 0.0
    %961 = vmatprep.subr.mxu0 0.0
    %962 = vmatpush2.msra.mxu0 0.0
    %963 = vmatprep.subr.mxu0 0.0
    %964 = vmatpush2.msra.mxu0 0.0
    %965 = vmatprep.subr.mxu0 0.0
    %966 = vmatpush2.msra.mxu0 0.0
    %967 = vmatprep.subr.mxu0 0.0
    %968 = vmatpush2.msra.mxu0 0.0
    %969 = vmatprep.subr.mxu0 0.0
    %970 = vmatpush2.msra.mxu0 0.0
    %971 = vmatprep.subr.mxu0 0.0
    %972 = vmatpush2.msra.mxu0 0.0
    %973 = vmatprep.subr.mxu0 0.0
    %974 = vmatpush2.msra.mxu0 0.0
    %975 = vmatprep.subr.mxu0 0.0
    %976 = vmatpush2.msra.mxu0 0.0
    %977 = vmatprep.mubr.f32.mxu0 0.0
    %v978 = vand.u32 %v510, 4294901760
    %979 = vmatmul.mubr.f32.gmra.mxu0 %v978
    %v980 = vpop.f32.mrf.mxu0
    %v981 = vadd.f32 %v907, %v980
    %v982 = vpop.f32.mrf.mxu0
    %983 = vdwg.mxu0
    %985 = vrot.lane.b32.xlu0 %v981, 32
    %v986 = vpop.permute.xlu0 %985
    %vm988 = vcmask 523520
    %989 = vst.msk [vmem:[#allocation2] sm:$0xff] %vm988, %v986
    %v990 = vld [vmem:[%s0 + $0x10] sm:$0xff]
    %991 = vset.pattern.permute.xlu0 0
    %992 = vperm.xlu0 %991, %v990
    %v993 = vpop.permute.xlu0 %992
    %vm994 = vcmp.eq.s32.totalorder %v993, %v16
    %v995 = vsel %vm994, 1, 0
    %v996 = vcvt.s32.f32 %v995
    %v998 = vsel %vm24, %v996, 0
    %1000 = vmatprep.subr.mxu0 0.0
    %1001 = vmatpush1.msra.mxu0 0.0
    %1002 = vmatprep.subr.mxu0 0.0
    %1003 = vmatpush1.msra.mxu0 0.0
    %1004 = vmatprep.subr.mxu0 0.0
    %1005 = vmatpush1.msra.mxu0 0.0
    %1006 = vmatprep.subr.mxu0 0.0
    %1007 = vmatpush1.msra.mxu0 0.0
    %1008 = vmatprep.subr.mxu0 0.0
    %1009 = vmatpush1.msra.mxu0 0.0
    %1010 = vmatprep.subr.mxu0 0.0
    %1011 = vmatpush1.msra.mxu0 0.0
    %1012 = vmatprep.subr.mxu0 0.0
    %1013 = vmatpush1.msra.mxu0 0.0
    %1014 = vmatprep.subr.mxu0 0.0
    %1015 = vmatpush1.msra.mxu0 0.0
    %1016 = vmatprep.subr.mxu0 0.0
    %1017 = vmatpush1.msra.mxu0 0.0
    %1018 = vmatprep.subr.mxu0 0.0
    %1019 = vmatpush1.msra.mxu0 0.0
    %1020 = vmatprep.subr.mxu0 0.0
    %1021 = vmatpush1.msra.mxu0 0.0
    %1022 = vmatprep.subr.mxu0 0.0
    %1023 = vmatpush1.msra.mxu0 0.0
    %1024 = vmatprep.subr.mxu0 0.0
    %1025 = vmatpush1.msra.mxu0 0.0
    %1026 = vmatprep.subr.mxu0 0.0
    %v1027 = vand.u32 %v14, 4294901760
    %1028 = vmatpush1.msra.mxu0 %v1027
    %1029 = vmatprep.subr.mxu0 0.0
    %v1030 = vand.u32 %v13, 4294901760
    %1031 = vmatpush1.msra.mxu0 %v1030
    %1032 = vmatprep.subr.mxu0 0.0
    %v1033 = vand.u32 %v12, 4294901760
    %1034 = vmatpush1.msra.mxu0 %v1033
    %1035 = vmatprep.subr.mxu0 0.0
    %1036 = vmatpush2.msra.mxu0 0.0
    %1037 = vmatprep.subr.mxu0 0.0
    %1038 = vmatpush2.msra.mxu0 0.0
    %1039 = vmatprep.subr.mxu0 0.0
    %1040 = vmatpush2.msra.mxu0 0.0
    %1041 = vmatprep.subr.mxu0 0.0
    %1042 = vmatpush2.msra.mxu0 0.0
    %1043 = vmatprep.subr.mxu0 0.0
    %1044 = vmatpush2.msra.mxu0 0.0
    %1045 = vmatprep.subr.mxu0 0.0
    %1046 = vmatpush2.msra.mxu0 0.0
    %1047 = vmatprep.subr.mxu0 0.0
    %1048 = vmatpush2.msra.mxu0 0.0
    %1049 = vmatprep.subr.mxu0 0.0
    %1050 = vmatpush2.msra.mxu0 0.0
    %1051 = vmatprep.subr.mxu0 0.0
    %1052 = vmatpush2.msra.mxu0 0.0
    %1053 = vmatprep.subr.mxu0 0.0
    %1054 = vmatpush2.msra.mxu0 0.0
    %1055 = vmatprep.subr.mxu0 0.0
    %1056 = vmatpush2.msra.mxu0 0.0
    %1057 = vmatprep.subr.mxu0 0.0
    %1058 = vmatpush2.msra.mxu0 0.0
    %1059 = vmatprep.subr.mxu0 0.0
    %1060 = vmatpush2.msra.mxu0 0.0
    %1061 = vmatprep.subr.mxu0 0.0
    %1062 = vmatpush2.msra.mxu0 0.0
    %1063 = vmatprep.subr.mxu0 0.0
    %1064 = vmatpush2.msra.mxu0 0.0
    %1065 = vmatprep.subr.mxu0 0.0
    %1066 = vmatpush2.msra.mxu0 0.0
    %1067 = vmatprep.mubr.f32.mxu0 0.0
    %v1068 = vand.u32 %v998, 4294901760
    %v1069 = vsub.f32 %v998, %v1068
    %v1070 = vand.u32 %v1069, 4294901760
    %v1071 = vsub.f32 %v1069, %v1070
    %v1072 = vand.u32 %v1071, 4294901760
    %1073 = vmatmul.mubr.f32.gmra.mxu0 %v1072
    %v1074 = vpop.f32.mrf.mxu0
    %v1075 = vadd.f32 0.0, %v1074
    %v1076 = vpop.f32.mrf.mxu0
    %1077 = vdwg.mxu0
    %1078 = vmatprep.subr.mxu0 0.0
    %1079 = vmatpush1.msra.mxu0 0.0
    %1080 = vmatprep.subr.mxu0 0.0
    %1081 = vmatpush1.msra.mxu0 0.0
    %1082 = vmatprep.subr.mxu0 0.0
    %1083 = vmatpush1.msra.mxu0 0.0
    %1084 = vmatprep.subr.mxu0 0.0
    %1085 = vmatpush1.msra.mxu0 0.0
    %1086 = vmatprep.subr.mxu0 0.0
    %1087 = vmatpush1.msra.mxu0 0.0
    %1088 = vmatprep.subr.mxu0 0.0
    %1089 = vmatpush1.msra.mxu0 0.0
    %1090 = vmatprep.subr.mxu0 0.0
    %1091 = vmatpush1.msra.mxu0 0.0
    %1092 = vmatprep.subr.mxu0 0.0
    %1093 = vmatpush1.msra.mxu0 0.0
    %1094 = vmatprep.subr.mxu0 0.0
    %1095 = vmatpush1.msra.mxu0 0.0
    %1096 = vmatprep.subr.mxu0 0.0
    %1097 = vmatpush1.msra.mxu0 0.0
    %1098 = vmatprep.subr.mxu0 0.0
    %1099 = vmatpush1.msra.mxu0 0.0
    %1100 = vmatprep.subr.mxu0 0.0
    %1101 = vmatpush1.msra.mxu0 0.0
    %1102 = vmatprep.subr.mxu0 0.0
    %1103 = vmatpush1.msra.mxu0 0.0
    %1104 = vmatprep.subr.mxu0 0.0
    %v1105 = vand.u32 %v14, 4294901760
    %v1106 = vsub.f32 %v14, %v1105
    %v1107 = vand.u32 %v1106, 4294901760
    %v1108 = vsub.f32 %v1106, %v1107
    %v1109 = vand.u32 %v1108, 4294901760
    %1110 = vmatpush1.msra.mxu0 %v1109
    %1111 = vmatprep.subr.mxu0 0.0
    %v1112 = vand.u32 %v13, 4294901760
    %v1113 = vsub.f32 %v13, %v1112
    %v1114 = vand.u32 %v1113, 4294901760
    %v1115 = vsub.f32 %v1113, %v1114
    %v1116 = vand.u32 %v1115, 4294901760
    %1117 = vmatpush1.msra.mxu0 %v1116
    %1118 = vmatprep.subr.mxu0 0.0
    %v1119 = vand.u32 %v12, 4294901760
    %v1120 = vsub.f32 %v12, %v1119
    %v1121 = vand.u32 %v1120, 4294901760
    %v1122 = vsub.f32 %v1120, %v1121
    %v1123 = vand.u32 %v1122, 4294901760
    %1124 = vmatpush1.msra.mxu0 %v1123
    %1125 = vmatprep.subr.mxu0 0.0
    %1126 = vmatpush2.msra.mxu0 0.0
    %1127 = vmatprep.subr.mxu0 0.0
    %1128 = vmatpush2.msra.mxu0 0.0
    %1129 = vmatprep.subr.mxu0 0.0
    %1130 = vmatpush2.msra.mxu0 0.0
    %1131 = vmatprep.subr.mxu0 0.0
    %1132 = vmatpush2.msra.mxu0 0.0
    %1133 = vmatprep.subr.mxu0 0.0
    %1134 = vmatpush2.msra.mxu0 0.0
    %1135 = vmatprep.subr.mxu0 0.0
    %1136 = vmatpush2.msra.mxu0 0.0
    %1137 = vmatprep.subr.mxu0 0.0
    %1138 = vmatpush2.msra.mxu0 0.0
    %1139 = vmatprep.subr.mxu0 0.0
    %1140 = vmatpush2.msra.mxu0 0.0
    %1141 = vmatprep.subr.mxu0 0.0
    %1142 = vmatpush2.msra.mxu0 0.0
    %1143 = vmatprep.subr.mxu0 0.0
    %1144 = vmatpush2.msra.mxu0 0.0
    %1145 = vmatprep.subr.mxu0 0.0
    %1146 = vmatpush2.msra.mxu0 0.0
    %1147 = vmatprep.subr.mxu0 0.0
    %1148 = vmatpush2.msra.mxu0 0.0
    %1149 = vmatprep.subr.mxu0 0.0
    %1150 = vmatpush2.msra.mxu0 0.0
    %1151 = vmatprep.subr.mxu0 0.0
    %1152 = vmatpush2.msra.mxu0 0.0
    %1153 = vmatprep.subr.mxu0 0.0
    %1154 = vmatpush2.msra.mxu0 0.0
    %1155 = vmatprep.subr.mxu0 0.0
    %1156 = vmatpush2.msra.mxu0 0.0
    %1157 = vmatprep.mubr.f32.mxu0 0.0
    %v1158 = vand.u32 %v998, 4294901760
    %1159 = vmatmul.mubr.f32.gmra.mxu0 %v1158
    %v1160 = vpop.f32.mrf.mxu0
    %v1161 = vadd.f32 %v1075, %v1160
    %v1162 = vpop.f32.mrf.mxu0
    %1163 = vdwg.mxu0
    %1164 = vmatprep.subr.mxu0 0.0
    %1165 = vmatpush1.msra.mxu0 0.0
    %1166 = vmatprep.subr.mxu0 0.0
    %1167 = vmatpush1.msra.mxu0 0.0
    %1168 = vmatprep.subr.mxu0 0.0
    %1169 = vmatpush1.msra.mxu0 0.0
    %1170 = vmatprep.subr.mxu0 0.0
    %1171 = vmatpush1.msra.mxu0 0.0
    %1172 = vmatprep.subr.mxu0 0.0
    %1173 = vmatpush1.msra.mxu0 0.0
    %1174 = vmatprep.subr.mxu0 0.0
    %1175 = vmatpush1.msra.mxu0 0.0
    %1176 = vmatprep.subr.mxu0 0.0
    %1177 = vmatpush1.msra.mxu0 0.0
    %1178 = vmatprep.subr.mxu0 0.0
    %1179 = vmatpush1.msra.mxu0 0.0
    %1180 = vmatprep.subr.mxu0 0.0
    %1181 = vmatpush1.msra.mxu0 0.0
    %1182 = vmatprep.subr.mxu0 0.0
    %1183 = vmatpush1.msra.mxu0 0.0
    %1184 = vmatprep.subr.mxu0 0.0
    %1185 = vmatpush1.msra.mxu0 0.0
    %1186 = vmatprep.subr.mxu0 0.0
    %1187 = vmatpush1.msra.mxu0 0.0
    %1188 = vmatprep.subr.mxu0 0.0
    %1189 = vmatpush1.msra.mxu0 0.0
    %1190 = vmatprep.subr.mxu0 0.0
    %v1191 = vand.u32 %v14, 4294901760
    %v1192 = vsub.f32 %v14, %v1191
    %1193 = vmatpush1.msra.mxu0 %v1192
    %1194 = vmatprep.subr.mxu0 0.0
    %v1195 = vand.u32 %v13, 4294901760
    %v1196 = vsub.f32 %v13, %v1195
    %1197 = vmatpush1.msra.mxu0 %v1196
    %1198 = vmatprep.subr.mxu0 0.0
    %v1199 = vand.u32 %v12, 4294901760
    %v1200 = vsub.f32 %v12, %v1199
    %1201 = vmatpush1.msra.mxu0 %v1200
    %1202 = vmatprep.subr.mxu0 0.0
    %1203 = vmatpush2.msra.mxu0 0.0
    %1204 = vmatprep.subr.mxu0 0.0
    %1205 = vmatpush2.msra.mxu0 0.0
    %1206 = vmatprep.subr.mxu0 0.0
    %1207 = vmatpush2.msra.mxu0 0.0
    %1208 = vmatprep.subr.mxu0 0.0
    %1209 = vmatpush2.msra.mxu0 0.0
    %1210 = vmatprep.subr.mxu0 0.0
    %1211 = vmatpush2.msra.mxu0 0.0
    %1212 = vmatprep.subr.mxu0 0.0
    %1213 = vmatpush2.msra.mxu0 0.0
    %1214 = vmatprep.subr.mxu0 0.0
    %1215 = vmatpush2.msra.mxu0 0.0
    %1216 = vmatprep.subr.mxu0 0.0
    %1217 = vmatpush2.msra.mxu0 0.0
    %1218 = vmatprep.subr.mxu0 0.0
    %1219 = vmatpush2.msra.mxu0 0.0
    %1220 = vmatprep.subr.mxu0 0.0
    %1221 = vmatpush2.msra.mxu0 0.0
    %1222 = vmatprep.subr.mxu0 0.0
    %1223 = vmatpush2.msra.mxu0 0.0
    %1224 = vmatprep.subr.mxu0 0.0
    %1225 = vmatpush2.msra.mxu0 0.0
    %1226 = vmatprep.subr.mxu0 0.0
    %1227 = vmatpush2.msra.mxu0 0.0
    %1228 = vmatprep.subr.mxu0 0.0
    %1229 = vmatpush2.msra.mxu0 0.0
    %1230 = vmatprep.subr.mxu0 0.0
    %1231 = vmatpush2.msra.mxu0 0.0
    %1232 = vmatprep.subr.mxu0 0.0
    %1233 = vmatpush2.msra.mxu0 0.0
    %1234 = vmatprep.mubr.f32.mxu0 0.0
    %v1235 = vand.u32 %v998, 4294901760
    %v1236 = vsub.f32 %v998, %v1235
    %1237 = vmatmul.mubr.f32.gmra.mxu0 %v1236
    %v1238 = vpop.f32.mrf.mxu0
    %v1239 = vadd.f32 %v1161, %v1238
    %v1240 = vpop.f32.mrf.mxu0
    %1241 = vdwg.mxu0
    %1242 = vmatprep.subr.mxu0 0.0
    %1243 = vmatpush1.msra.mxu0 0.0
    %1244 = vmatprep.subr.mxu0 0.0
    %1245 = vmatpush1.msra.mxu0 0.0
    %1246 = vmatprep.subr.mxu0 0.0
    %1247 = vmatpush1.msra.mxu0 0.0
    %1248 = vmatprep.subr.mxu0 0.0
    %1249 = vmatpush1.msra.mxu0 0.0
    %1250 = vmatprep.subr.mxu0 0.0
    %1251 = vmatpush1.msra.mxu0 0.0
    %1252 = vmatprep.subr.mxu0 0.0
    %1253 = vmatpush1.msra.mxu0 0.0
    %1254 = vmatprep.subr.mxu0 0.0
    %1255 = vmatpush1.msra.mxu0 0.0
    %1256 = vmatprep.subr.mxu0 0.0
    %1257 = vmatpush1.msra.mxu0 0.0
    %1258 = vmatprep.subr.mxu0 0.0
    %1259 = vmatpush1.msra.mxu0 0.0
    %1260 = vmatprep.subr.mxu0 0.0
    %1261 = vmatpush1.msra.mxu0 0.0
    %1262 = vmatprep.subr.mxu0 0.0
    %1263 = vmatpush1.msra.mxu0 0.0
    %1264 = vmatprep.subr.mxu0 0.0
    %1265 = vmatpush1.msra.mxu0 0.0
    %1266 = vmatprep.subr.mxu0 0.0
    %1267 = vmatpush1.msra.mxu0 0.0
    %1268 = vmatprep.subr.mxu0 0.0
    %v1269 = vand.u32 %v14, 4294901760
    %1270 = vmatpush1.msra.mxu0 %v1269
    %1271 = vmatprep.subr.mxu0 0.0
    %v1272 = vand.u32 %v13, 4294901760
    %1273 = vmatpush1.msra.mxu0 %v1272
    %1274 = vmatprep.subr.mxu0 0.0
    %v1275 = vand.u32 %v12, 4294901760
    %1276 = vmatpush1.msra.mxu0 %v1275
    %1277 = vmatprep.subr.mxu0 0.0
    %1278 = vmatpush2.msra.mxu0 0.0
    %1279 = vmatprep.subr.mxu0 0.0
    %1280 = vmatpush2.msra.mxu0 0.0
    %1281 = vmatprep.subr.mxu0 0.0
    %1282 = vmatpush2.msra.mxu0 0.0
    %1283 = vmatprep.subr.mxu0 0.0
    %1284 = vmatpush2.msra.mxu0 0.0
    %1285 = vmatprep.subr.mxu0 0.0
    %1286 = vmatpush2.msra.mxu0 0.0
    %1287 = vmatprep.subr.mxu0 0.0
    %1288 = vmatpush2.msra.mxu0 0.0
    %1289 = vmatprep.subr.mxu0 0.0
    %1290 = vmatpush2.msra.mxu0 0.0
    %1291 = vmatprep.subr.mxu0 0.0
    %1292 = vmatpush2.msra.mxu0 0.0
    %1293 = vmatprep.subr.mxu0 0.0
    %1294 = vmatpush2.msra.mxu0 0.0
    %1295 = vmatprep.subr.mxu0 0.0
    %1296 = vmatpush2.msra.mxu0 0.0
    %1297 = vmatprep.subr.mxu0 0.0
    %1298 = vmatpush2.msra.mxu0 0.0
    %1299 = vmatprep.subr.mxu0 0.0
    %1300 = vmatpush2.msra.mxu0 0.0
    %1301 = vmatprep.subr.mxu0 0.0
    %1302 = vmatpush2.msra.mxu0 0.0
    %1303 = vmatprep.subr.mxu0 0.0
    %1304 = vmatpush2.msra.mxu0 0.0
    %1305 = vmatprep.subr.mxu0 0.0
    %1306 = vmatpush2.msra.mxu0 0.0
    %1307 = vmatprep.subr.mxu0 0.0
    %1308 = vmatpush2.msra.mxu0 0.0
    %1309 = vmatprep.mubr.f32.mxu0 0.0
    %v1310 = vand.u32 %v998, 4294901760
    %v1311 = vsub.f32 %v998, %v1310
    %v1312 = vand.u32 %v1311, 4294901760
    %1313 = vmatmul.mubr.f32.gmra.mxu0 %v1312
    %v1314 = vpop.f32.mrf.mxu0
    %v1315 = vadd.f32 %v1239, %v1314
    %v1316 = vpop.f32.mrf.mxu0
    %1317 = vdwg.mxu0
    %1318 = vmatprep.subr.mxu0 0.0
    %1319 = vmatpush1.msra.mxu0 0.0
    %1320 = vmatprep.subr.mxu0 0.0
    %1321 = vmatpush1.msra.mxu0 0.0
    %1322 = vmatprep.subr.mxu0 0.0
    %1323 = vmatpush1.msra.mxu0 0.0
    %1324 = vmatprep.subr.mxu0 0.0
    %1325 = vmatpush1.msra.mxu0 0.0
    %1326 = vmatprep.subr.mxu0 0.0
    %1327 = vmatpush1.msra.mxu0 0.0
    %1328 = vmatprep.subr.mxu0 0.0
    %1329 = vmatpush1.msra.mxu0 0.0
    %1330 = vmatprep.subr.mxu0 0.0
    %1331 = vmatpush1.msra.mxu0 0.0
    %1332 = vmatprep.subr.mxu0 0.0
    %1333 = vmatpush1.msra.mxu0 0.0
    %1334 = vmatprep.subr.mxu0 0.0
    %1335 = vmatpush1.msra.mxu0 0.0
    %1336 = vmatprep.subr.mxu0 0.0
    %1337 = vmatpush1.msra.mxu0 0.0
    %1338 = vmatprep.subr.mxu0 0.0
    %1339 = vmatpush1.msra.mxu0 0.0
    %1340 = vmatprep.subr.mxu0 0.0
    %1341 = vmatpush1.msra.mxu0 0.0
    %1342 = vmatprep.subr.mxu0 0.0
    %1343 = vmatpush1.msra.mxu0 0.0
    %1344 = vmatprep.subr.mxu0 0.0
    %v1345 = vand.u32 %v14, 4294901760
    %v1346 = vsub.f32 %v14, %v1345
    %v1347 = vand.u32 %v1346, 4294901760
    %1348 = vmatpush1.msra.mxu0 %v1347
    %1349 = vmatprep.subr.mxu0 0.0
    %v1350 = vand.u32 %v13, 4294901760
    %v1351 = vsub.f32 %v13, %v1350
    %v1352 = vand.u32 %v1351, 4294901760
    %1353 = vmatpush1.msra.mxu0 %v1352
    %1354 = vmatprep.subr.mxu0 0.0
    %v1355 = vand.u32 %v12, 4294901760
    %v1356 = vsub.f32 %v12, %v1355
    %v1357 = vand.u32 %v1356, 4294901760
    %1358 = vmatpush1.msra.mxu0 %v1357
    %1359 = vmatprep.subr.mxu0 0.0
    %1360 = vmatpush2.msra.mxu0 0.0
    %1361 = vmatprep.subr.mxu0 0.0
    %1362 = vmatpush2.msra.mxu0 0.0
    %1363 = vmatprep.subr.mxu0 0.0
    %1364 = vmatpush2.msra.mxu0 0.0
    %1365 = vmatprep.subr.mxu0 0.0
    %1366 = vmatpush2.msra.mxu0 0.0
    %1367 = vmatprep.subr.mxu0 0.0
    %1368 = vmatpush2.msra.mxu0 0.0
    %1369 = vmatprep.subr.mxu0 0.0
    %1370 = vmatpush2.msra.mxu0 0.0
    %1371 = vmatprep.subr.mxu0 0.0
    %1372 = vmatpush2.msra.mxu0 0.0
    %1373 = vmatprep.subr.mxu0 0.0
    %1374 = vmatpush2.msra.mxu0 0.0
    %1375 = vmatprep.subr.mxu0 0.0
    %1376 = vmatpush2.msra.mxu0 0.0
    %1377 = vmatprep.subr.mxu0 0.0
    %1378 = vmatpush2.msra.mxu0 0.0
    %1379 = vmatprep.subr.mxu0 0.0
    %1380 = vmatpush2.msra.mxu0 0.0
    %1381 = vmatprep.subr.mxu0 0.0
    %1382 = vmatpush2.msra.mxu0 0.0
    %1383 = vmatprep.subr.mxu0 0.0
    %1384 = vmatpush2.msra.mxu0 0.0
    %1385 = vmatprep.subr.mxu0 0.0
    %1386 = vmatpush2.msra.mxu0 0.0
    %1387 = vmatprep.subr.mxu0 0.0
    %1388 = vmatpush2.msra.mxu0 0.0
    %1389 = vmatprep.subr.mxu0 0.0
    %1390 = vmatpush2.msra.mxu0 0.0
    %1391 = vmatprep.mubr.f32.mxu0 0.0
    %v1392 = vand.u32 %v998, 4294901760
    %1393 = vmatmul.mubr.f32.gmra.mxu0 %v1392
    %v1394 = vpop.f32.mrf.mxu0
    %v1395 = vadd.f32 %v1315, %v1394
    %v1396 = vpop.f32.mrf.mxu0
    %1397 = vdwg.mxu0
    %1398 = vmatprep.subr.mxu0 0.0
    %1399 = vmatpush1.msra.mxu0 0.0
    %1400 = vmatprep.subr.mxu0 0.0
    %1401 = vmatpush1.msra.mxu0 0.0
    %1402 = vmatprep.subr.mxu0 0.0
    %1403 = vmatpush1.msra.mxu0 0.0
    %1404 = vmatprep.subr.mxu0 0.0
    %1405 = vmatpush1.msra.mxu0 0.0
    %1406 = vmatprep.subr.mxu0 0.0
    %1407 = vmatpush1.msra.mxu0 0.0
    %1408 = vmatprep.subr.mxu0 0.0
    %1409 = vmatpush1.msra.mxu0 0.0
    %1410 = vmatprep.subr.mxu0 0.0
    %1411 = vmatpush1.msra.mxu0 0.0
    %1412 = vmatprep.subr.mxu0 0.0
    %1413 = vmatpush1.msra.mxu0 0.0
    %1414 = vmatprep.subr.mxu0 0.0
    %1415 = vmatpush1.msra.mxu0 0.0
    %1416 = vmatprep.subr.mxu0 0.0
    %1417 = vmatpush1.msra.mxu0 0.0
    %1418 = vmatprep.subr.mxu0 0.0
    %1419 = vmatpush1.msra.mxu0 0.0
    %1420 = vmatprep.subr.mxu0 0.0
    %1421 = vmatpush1.msra.mxu0 0.0
    %1422 = vmatprep.subr.mxu0 0.0
    %1423 = vmatpush1.msra.mxu0 0.0
    %1424 = vmatprep.subr.mxu0 0.0
    %v1425 = vand.u32 %v14, 4294901760
    %1426 = vmatpush1.msra.mxu0 %v1425
    %1427 = vmatprep.subr.mxu0 0.0
    %v1428 = vand.u32 %v13, 4294901760
    %1429 = vmatpush1.msra.mxu0 %v1428
    %1430 = vmatprep.subr.mxu0 0.0
    %v1431 = vand.u32 %v12, 4294901760
    %1432 = vmatpush1.msra.mxu0 %v1431
    %1433 = vmatprep.subr.mxu0 0.0
    %1434 = vmatpush2.msra.mxu0 0.0
    %1435 = vmatprep.subr.mxu0 0.0
    %1436 = vmatpush2.msra.mxu0 0.0
    %1437 = vmatprep.subr.mxu0 0.0
    %1438 = vmatpush2.msra.mxu0 0.0
    %1439 = vmatprep.subr.mxu0 0.0
    %1440 = vmatpush2.msra.mxu0 0.0
    %1441 = vmatprep.subr.mxu0 0.0
    %1442 = vmatpush2.msra.mxu0 0.0
    %1443 = vmatprep.subr.mxu0 0.0
    %1444 = vmatpush2.msra.mxu0 0.0
    %1445 = vmatprep.subr.mxu0 0.0
    %1446 = vmatpush2.msra.mxu0 0.0
    %1447 = vmatprep.subr.mxu0 0.0
    %1448 = vmatpush2.msra.mxu0 0.0
    %1449 = vmatprep.subr.mxu0 0.0
    %1450 = vmatpush2.msra.mxu0 0.0
    %1451 = vmatprep.subr.mxu0 0.0
    %1452 = vmatpush2.msra.mxu0 0.0
    %1453 = vmatprep.subr.mxu0 0.0
    %1454 = vmatpush2.msra.mxu0 0.0
    %1455 = vmatprep.subr.mxu0 0.0
    %1456 = vmatpush2.msra.mxu0 0.0
    %1457 = vmatprep.subr.mxu0 0.0
    %1458 = vmatpush2.msra.mxu0 0.0
    %1459 = vmatprep.subr.mxu0 0.0
    %1460 = vmatpush2.msra.mxu0 0.0
    %1461 = vmatprep.subr.mxu0 0.0
    %1462 = vmatpush2.msra.mxu0 0.0
    %1463 = vmatprep.subr.mxu0 0.0
    %1464 = vmatpush2.msra.mxu0 0.0
    %1465 = vmatprep.mubr.f32.mxu0 0.0
    %v1466 = vand.u32 %v998, 4294901760
    %1467 = vmatmul.mubr.f32.gmra.mxu0 %v1466
    %v1468 = vpop.f32.mrf.mxu0
    %v1469 = vadd.f32 %v1395, %v1468
    %v1470 = vpop.f32.mrf.mxu0
    %1471 = vdwg.mxu0
    %1473 = vrot.lane.b32.xlu0 %v1469, 64
    %v1474 = vpop.permute.xlu0 %1473
    %vm1476 = vcmask 785920
    %1477 = vst.msk [vmem:[#allocation2] sm:$0xff] %vm1476, %v1474
    %v1478 = vld [vmem:[%s0 + $0x18] sm:$0xff]
    %1479 = vset.pattern.permute.xlu0 0
    %1480 = vperm.xlu0 %1479, %v1478
    %v1481 = vpop.permute.xlu0 %1480
    %vm1482 = vcmp.eq.s32.totalorder %v1481, %v16
    %v1483 = vsel %vm1482, 1, 0
    %v1484 = vcvt.s32.f32 %v1483
    %v1486 = vsel %vm24, %v1484, 0
    %1488 = vmatprep.subr.mxu0 0.0
    %1489 = vmatpush1.msra.mxu0 0.0
    %1490 = vmatprep.subr.mxu0 0.0
    %1491 = vmatpush1.msra.mxu0 0.0
    %1492 = vmatprep.subr.mxu0 0.0
    %1493 = vmatpush1.msra.mxu0 0.0
    %1494 = vmatprep.subr.mxu0 0.0
    %1495 = vmatpush1.msra.mxu0 0.0
    %1496 = vmatprep.subr.mxu0 0.0
    %1497 = vmatpush1.msra.mxu0 0.0
    %1498 = vmatprep.subr.mxu0 0.0
    %1499 = vmatpush1.msra.mxu0 0.0
    %1500 = vmatprep.subr.mxu0 0.0
    %1501 = vmatpush1.msra.mxu0 0.0
    %1502 = vmatprep.subr.mxu0 0.0
    %1503 = vmatpush1.msra.mxu0 0.0
    %1504 = vmatprep.subr.mxu0 0.0
    %1505 = vmatpush1.msra.mxu0 0.0
    %1506 = vmatprep.subr.mxu0 0.0
    %1507 = vmatpush1.msra.mxu0 0.0
    %1508 = vmatprep.subr.mxu0 0.0
    %1509 = vmatpush1.msra.mxu0 0.0
    %1510 = vmatprep.subr.mxu0 0.0
    %1511 = vmatpush1.msra.mxu0 0.0
    %1512 = vmatprep.subr.mxu0 0.0
    %1513 = vmatpush1.msra.mxu0 0.0
    %1514 = vmatprep.subr.mxu0 0.0
    %v1515 = vand.u32 %v14, 4294901760
    %1516 = vmatpush1.msra.mxu0 %v1515
    %1517 = vmatprep.subr.mxu0 0.0
    %v1518 = vand.u32 %v13, 4294901760
    %1519 = vmatpush1.msra.mxu0 %v1518
    %1520 = vmatprep.subr.mxu0 0.0
    %v1521 = vand.u32 %v12, 4294901760
    %1522 = vmatpush1.msra.mxu0 %v1521
    %1523 = vmatprep.subr.mxu0 0.0
    %1524 = vmatpush2.msra.mxu0 0.0
    %1525 = vmatprep.subr.mxu0 0.0
    %1526 = vmatpush2.msra.mxu0 0.0
    %1527 = vmatprep.subr.mxu0 0.0
    %1528 = vmatpush2.msra.mxu0 0.0
    %1529 = vmatprep.subr.mxu0 0.0
    %1530 = vmatpush2.msra.mxu0 0.0
    %1531 = vmatprep.subr.mxu0 0.0
    %1532 = vmatpush2.msra.mxu0 0.0
    %1533 = vmatprep.subr.mxu0 0.0
    %1534 = vmatpush2.msra.mxu0 0.0
    %1535 = vmatprep.subr.mxu0 0.0
    %1536 = vmatpush2.msra.mxu0 0.0
    %1537 = vmatprep.subr.mxu0 0.0
    %1538 = vmatpush2.msra.mxu0 0.0
    %1539 = vmatprep.subr.mxu0 0.0
    %1540 = vmatpush2.msra.mxu0 0.0
    %1541 = vmatprep.subr.mxu0 0.0
    %1542 = vmatpush2.msra.mxu0 0.0
    %1543 = vmatprep.subr.mxu0 0.0
    %1544 = vmatpush2.msra.mxu0 0.0
    %1545 = vmatprep.subr.mxu0 0.0
    %1546 = vmatpush2.msra.mxu0 0.0
    %1547 = vmatprep.subr.mxu0 0.0
    %1548 = vmatpush2.msra.mxu0 0.0
    %1549 = vmatprep.subr.mxu0 0.0
    %1550 = vmatpush2.msra.mxu0 0.0
    %1551 = vmatprep.subr.mxu0 0.0
    %1552 = vmatpush2.msra.mxu0 0.0
    %1553 = vmatprep.subr.mxu0 0.0
    %1554 = vmatpush2.msra.mxu0 0.0
    %1555 = vmatprep.mubr.f32.mxu0 0.0
    %v1556 = vand.u32 %v1486, 4294901760
    %v1557 = vsub.f32 %v1486, %v1556
    %v1558 = vand.u32 %v1557, 4294901760
    %v1559 = vsub.f32 %v1557, %v1558
    %v1560 = vand.u32 %v1559, 4294901760
    %1561 = vmatmul.mubr.f32.gmra.mxu0 %v1560
    %v1562 = vpop.f32.mrf.mxu0
    %v1563 = vadd.f32 0.0, %v1562
    %v1564 = vpop.f32.mrf.mxu0
    %1565 = vdwg.mxu0
    %1566 = vmatprep.subr.mxu0 0.0
    %1567 = vmatpush1.msra.mxu0 0.0
    %1568 = vmatprep.subr.mxu0 0.0
    %1569 = vmatpush1.msra.mxu0 0.0
    %1570 = vmatprep.subr.mxu0 0.0
    %1571 = vmatpush1.msra.mxu0 0.0
    %1572 = vmatprep.subr.mxu0 0.0
    %1573 = vmatpush1.msra.mxu0 0.0
    %1574 = vmatprep.subr.mxu0 0.0
    %1575 = vmatpush1.msra.mxu0 0.0
    %1576 = vmatprep.subr.mxu0 0.0
    %1577 = vmatpush1.msra.mxu0 0.0
    %1578 = vmatprep.subr.mxu0 0.0
    %1579 = vmatpush1.msra.mxu0 0.0
    %1580 = vmatprep.subr.mxu0 0.0
    %1581 = vmatpush1.msra.mxu0 0.0
    %1582 = vmatprep.subr.mxu0 0.0
    %1583 = vmatpush1.msra.mxu0 0.0
    %1584 = vmatprep.subr.mxu0 0.0
    %1585 = vmatpush1.msra.mxu0 0.0
    %1586 = vmatprep.subr.mxu0 0.0
    %1587 = vmatpush1.msra.mxu0 0.0
    %1588 = vmatprep.subr.mxu0 0.0
    %1589 = vmatpush1.msra.mxu0 0.0
    %1590 = vmatprep.subr.mxu0 0.0
    %1591 = vmatpush1.msra.mxu0 0.0
    %1592 = vmatprep.subr.mxu0 0.0
    %v1593 = vand.u32 %v14, 4294901760
    %v1594 = vsub.f32 %v14, %v1593
    %v1595 = vand.u32 %v1594, 4294901760
    %v1596 = vsub.f32 %v1594, %v1595
    %v1597 = vand.u32 %v1596, 4294901760
    %1598 = vmatpush1.msra.mxu0 %v1597
    %1599 = vmatprep.subr.mxu0 0.0
    %v1600 = vand.u32 %v13, 4294901760
    %v1601 = vsub.f32 %v13, %v1600
    %v1602 = vand.u32 %v1601, 4294901760
    %v1603 = vsub.f32 %v1601, %v1602
    %v1604 = vand.u32 %v1603, 4294901760
    %1605 = vmatpush1.msra.mxu0 %v1604
    %1606 = vmatprep.subr.mxu0 0.0
    %v1607 = vand.u32 %v12, 4294901760
    %v1608 = vsub.f32 %v12, %v1607
    %v1609 = vand.u32 %v1608, 4294901760
    %v1610 = vsub.f32 %v1608, %v1609
    %v1611 = vand.u32 %v1610, 4294901760
    %1612 = vmatpush1.msra.mxu0 %v1611
    %1613 = vmatprep.subr.mxu0 0.0
    %1614 = vmatpush2.msra.mxu0 0.0
    %1615 = vmatprep.subr.mxu0 0.0
    %1616 = vmatpush2.msra.mxu0 0.0
    %1617 = vmatprep.subr.mxu0 0.0
    %1618 = vmatpush2.msra.mxu0 0.0
    %1619 = vmatprep.subr.mxu0 0.0
    %1620 = vmatpush2.msra.mxu0 0.0
    %1621 = vmatprep.subr.mxu0 0.0
    %1622 = vmatpush2.msra.mxu0 0.0
    %1623 = vmatprep.subr.mxu0 0.0
    %1624 = vmatpush2.msra.mxu0 0.0
    %1625 = vmatprep.subr.mxu0 0.0
    %1626 = vmatpush2.msra.mxu0 0.0
    %1627 = vmatprep.subr.mxu0 0.0
    %1628 = vmatpush2.msra.mxu0 0.0
    %1629 = vmatprep.subr.mxu0 0.0
    %1630 = vmatpush2.msra.mxu0 0.0
    %1631 = vmatprep.subr.mxu0 0.0
    %1632 = vmatpush2.msra.mxu0 0.0
    %1633 = vmatprep.subr.mxu0 0.0
    %1634 = vmatpush2.msra.mxu0 0.0
    %1635 = vmatprep.subr.mxu0 0.0
    %1636 = vmatpush2.msra.mxu0 0.0
    %1637 = vmatprep.subr.mxu0 0.0
    %1638 = vmatpush2.msra.mxu0 0.0
    %1639 = vmatprep.subr.mxu0 0.0
    %1640 = vmatpush2.msra.mxu0 0.0
    %1641 = vmatprep.subr.mxu0 0.0
    %1642 = vmatpush2.msra.mxu0 0.0
    %1643 = vmatprep.subr.mxu0 0.0
    %1644 = vmatpush2.msra.mxu0 0.0
    %1645 = vmatprep.mubr.f32.mxu0 0.0
    %v1646 = vand.u32 %v1486, 4294901760
    %1647 = vmatmul.mubr.f32.gmra.mxu0 %v1646
    %v1648 = vpop.f32.mrf.mxu0
    %v1649 = vadd.f32 %v1563, %v1648
    %v1650 = vpop.f32.mrf.mxu0
    %1651 = vdwg.mxu0
    %1652 = vmatprep.subr.mxu0 0.0
    %1653 = vmatpush1.msra.mxu0 0.0
    %1654 = vmatprep.subr.mxu0 0.0
    %1655 = vmatpush1.msra.mxu0 0.0
    %1656 = vmatprep.subr.mxu0 0.0
    %1657 = vmatpush1.msra.mxu0 0.0
    %1658 = vmatprep.subr.mxu0 0.0
    %1659 = vmatpush1.msra.mxu0 0.0
    %1660 = vmatprep.subr.mxu0 0.0
    %1661 = vmatpush1.msra.mxu0 0.0
    %1662 = vmatprep.subr.mxu0 0.0
    %1663 = vmatpush1.msra.mxu0 0.0
    %1664 = vmatprep.subr.mxu0 0.0
    %1665 = vmatpush1.msra.mxu0 0.0
    %1666 = vmatprep.subr.mxu0 0.0
    %1667 = vmatpush1.msra.mxu0 0.0
    %1668 = vmatprep.subr.mxu0 0.0
    %1669 = vmatpush1.msra.mxu0 0.0
    %1670 = vmatprep.subr.mxu0 0.0
    %1671 = vmatpush1.msra.mxu0 0.0
    %1672 = vmatprep.subr.mxu0 0.0
    %1673 = vmatpush1.msra.mxu0 0.0
    %1674 = vmatprep.subr.mxu0 0.0
    %1675 = vmatpush1.msra.mxu0 0.0
    %1676 = vmatprep.subr.mxu0 0.0
    %1677 = vmatpush1.msra.mxu0 0.0
    %1678 = vmatprep.subr.mxu0 0.0
    %v1679 = vand.u32 %v14, 4294901760
    %v1680 = vsub.f32 %v14, %v1679
    %1681 = vmatpush1.msra.mxu0 %v1680
    %1682 = vmatprep.subr.mxu0 0.0
    %v1683 = vand.u32 %v13, 4294901760
    %v1684 = vsub.f32 %v13, %v1683
    %1685 = vmatpush1.msra.mxu0 %v1684
    %1686 = vmatprep.subr.mxu0 0.0
    %v1687 = vand.u32 %v12, 4294901760
    %v1688 = vsub.f32 %v12, %v1687
    %1689 = vmatpush1.msra.mxu0 %v1688
    %1690 = vmatprep.subr.mxu0 0.0
    %1691 = vmatpush2.msra.mxu0 0.0
    %1692 = vmatprep.subr.mxu0 0.0
    %1693 = vmatpush2.msra.mxu0 0.0
    %1694 = vmatprep.subr.mxu0 0.0
    %1695 = vmatpush2.msra.mxu0 0.0
    %1696 = vmatprep.subr.mxu0 0.0
    %1697 = vmatpush2.msra.mxu0 0.0
    %1698 = vmatprep.subr.mxu0 0.0
    %1699 = vmatpush2.msra.mxu0 0.0
    %1700 = vmatprep.subr.mxu0 0.0
    %1701 = vmatpush2.msra.mxu0 0.0
    %1702 = vmatprep.subr.mxu0 0.0
    %1703 = vmatpush2.msra.mxu0 0.0
    %1704 = vmatprep.subr.mxu0 0.0
    %1705 = vmatpush2.msra.mxu0 0.0
    %1706 = vmatprep.subr.mxu0 0.0
    %1707 = vmatpush2.msra.mxu0 0.0
    %1708 = vmatprep.subr.mxu0 0.0
    %1709 = vmatpush2.msra.mxu0 0.0
    %1710 = vmatprep.subr.mxu0 0.0
    %1711 = vmatpush2.msra.mxu0 0.0
    %1712 = vmatprep.subr.mxu0 0.0
    %1713 = vmatpush2.msra.mxu0 0.0
    %1714 = vmatprep.subr.mxu0 0.0
    %1715 = vmatpush2.msra.mxu0 0.0
    %1716 = vmatprep.subr.mxu0 0.0
    %1717 = vmatpush2.msra.mxu0 0.0
    %1718 = vmatprep.subr.mxu0 0.0
    %1719 = vmatpush2.msra.mxu0 0.0
    %1720 = vmatprep.subr.mxu0 0.0
    %1721 = vmatpush2.msra.mxu0 0.0
    %1722 = vmatprep.mubr.f32.mxu0 0.0
    %v1723 = vand.u32 %v1486, 4294901760
    %v1724 = vsub.f32 %v1486, %v1723
    %1725 = vmatmul.mubr.f32.gmra.mxu0 %v1724
    %v1726 = vpop.f32.mrf.mxu0
    %v1727 = vadd.f32 %v1649, %v1726
    %v1728 = vpop.f32.mrf.mxu0
    %1729 = vdwg.mxu0
    %1730 = vmatprep.subr.mxu0 0.0
    %1731 = vmatpush1.msra.mxu0 0.0
    %1732 = vmatprep.subr.mxu0 0.0
    %1733 = vmatpush1.msra.mxu0 0.0
    %1734 = vmatprep.subr.mxu0 0.0
    %1735 = vmatpush1.msra.mxu0 0.0
    %1736 = vmatprep.subr.mxu0 0.0
    %1737 = vmatpush1.msra.mxu0 0.0
    %1738 = vmatprep.subr.mxu0 0.0
    %1739 = vmatpush1.msra.mxu0 0.0
    %1740 = vmatprep.subr.mxu0 0.0
    %1741 = vmatpush1.msra.mxu0 0.0
    %1742 = vmatprep.subr.mxu0 0.0
    %1743 = vmatpush1.msra.mxu0 0.0
    %1744 = vmatprep.subr.mxu0 0.0
    %1745 = vmatpush1.msra.mxu0 0.0
    %1746 = vmatprep.subr.mxu0 0.0
    %1747 = vmatpush1.msra.mxu0 0.0
    %1748 = vmatprep.subr.mxu0 0.0
    %1749 = vmatpush1.msra.mxu0 0.0
    %1750 = vmatprep.subr.mxu0 0.0
    %1751 = vmatpush1.msra.mxu0 0.0
    %1752 = vmatprep.subr.mxu0 0.0
    %1753 = vmatpush1.msra.mxu0 0.0
    %1754 = vmatprep.subr.mxu0 0.0
    %1755 = vmatpush1.msra.mxu0 0.0
    %1756 = vmatprep.subr.mxu0 0.0
    %v1757 = vand.u32 %v14, 4294901760
    %1758 = vmatpush1.msra.mxu0 %v1757
    %1759 = vmatprep.subr.mxu0 0.0
    %v1760 = vand.u32 %v13, 4294901760
    %1761 = vmatpush1.msra.mxu0 %v1760
    %1762 = vmatprep.subr.mxu0 0.0
    %v1763 = vand.u32 %v12, 4294901760
    %1764 = vmatpush1.msra.mxu0 %v1763
    %1765 = vmatprep.subr.mxu0 0.0
    %1766 = vmatpush2.msra.mxu0 0.0
    %1767 = vmatprep.subr.mxu0 0.0
    %1768 = vmatpush2.msra.mxu0 0.0
    %1769 = vmatprep.subr.mxu0 0.0
    %1770 = vmatpush2.msra.mxu0 0.0
    %1771 = vmatprep.subr.mxu0 0.0
    %1772 = vmatpush2.msra.mxu0 0.0
    %1773 = vmatprep.subr.mxu0 0.0
    %1774 = vmatpush2.msra.mxu0 0.0
    %1775 = vmatprep.subr.mxu0 0.0
    %1776 = vmatpush2.msra.mxu0 0.0
    %1777 = vmatprep.subr.mxu0 0.0
    %1778 = vmatpush2.msra.mxu0 0.0
    %1779 = vmatprep.subr.mxu0 0.0
    %1780 = vmatpush2.msra.mxu0 0.0
    %1781 = vmatprep.subr.mxu0 0.0
    %1782 = vmatpush2.msra.mxu0 0.0
    %1783 = vmatprep.subr.mxu0 0.0
    %1784 = vmatpush2.msra.mxu0 0.0
    %1785 = vmatprep.subr.mxu0 0.0
    %1786 = vmatpush2.msra.mxu0 0.0
    %1787 = vmatprep.subr.mxu0 0.0
    %1788 = vmatpush2.msra.mxu0 0.0
    %1789 = vmatprep.subr.mxu0 0.0
    %1790 = vmatpush2.msra.mxu0 0.0
    %1791 = vmatprep.subr.mxu0 0.0
    %1792 = vmatpush2.msra.mxu0 0.0
    %1793 = vmatprep.subr.mxu0 0.0
    %1794 = vmatpush2.msra.mxu0 0.0
    %1795 = vmatprep.subr.mxu0 0.0
    %1796 = vmatpush2.msra.mxu0 0.0
    %1797 = vmatprep.mubr.f32.mxu0 0.0
    %v1798 = vand.u32 %v1486, 4294901760
    %v1799 = vsub.f32 %v1486, %v1798
    %v1800 = vand.u32 %v1799, 4294901760
    %1801 = vmatmul.mubr.f32.gmra.mxu0 %v1800
    %v1802 = vpop.f32.mrf.mxu0
    %v1803 = vadd.f32 %v1727, %v1802
    %v1804 = vpop.f32.mrf.mxu0
    %1805 = vdwg.mxu0
    %1806 = vmatprep.subr.mxu0 0.0
    %1807 = vmatpush1.msra.mxu0 0.0
    %1808 = vmatprep.subr.mxu0 0.0
    %1809 = vmatpush1.msra.mxu0 0.0
    %1810 = vmatprep.subr.mxu0 0.0
    %1811 = vmatpush1.msra.mxu0 0.0
    %1812 = vmatprep.subr.mxu0 0.0
    %1813 = vmatpush1.msra.mxu0 0.0
    %1814 = vmatprep.subr.mxu0 0.0
    %1815 = vmatpush1.msra.mxu0 0.0
    %1816 = vmatprep.subr.mxu0 0.0
    %1817 = vmatpush1.msra.mxu0 0.0
    %1818 = vmatprep.subr.mxu0 0.0
    %1819 = vmatpush1.msra.mxu0 0.0
    %1820 = vmatprep.subr.mxu0 0.0
    %1821 = vmatpush1.msra.mxu0 0.0
    %1822 = vmatprep.subr.mxu0 0.0
    %1823 = vmatpush1.msra.mxu0 0.0
    %1824 = vmatprep.subr.mxu0 0.0
    %1825 = vmatpush1.msra.mxu0 0.0
    %1826 = vmatprep.subr.mxu0 0.0
    %1827 = vmatpush1.msra.mxu0 0.0
    %1828 = vmatprep.subr.mxu0 0.0
    %1829 = vmatpush1.msra.mxu0 0.0
    %1830 = vmatprep.subr.mxu0 0.0
    %1831 = vmatpush1.msra.mxu0 0.0
    %1832 = vmatprep.subr.mxu0 0.0
    %v1833 = vand.u32 %v14, 4294901760
    %v1834 = vsub.f32 %v14, %v1833
    %v1835 = vand.u32 %v1834, 4294901760
    %1836 = vmatpush1.msra.mxu0 %v1835
    %1837 = vmatprep.subr.mxu0 0.0
    %v1838 = vand.u32 %v13, 4294901760
    %v1839 = vsub.f32 %v13, %v1838
    %v1840 = vand.u32 %v1839, 4294901760
    %1841 = vmatpush1.msra.mxu0 %v1840
    %1842 = vmatprep.subr.mxu0 0.0
    %v1843 = vand.u32 %v12, 4294901760
    %v1844 = vsub.f32 %v12, %v1843
    %v1845 = vand.u32 %v1844, 4294901760
    %1846 = vmatpush1.msra.mxu0 %v1845
    %1847 = vmatprep.subr.mxu0 0.0
    %1848 = vmatpush2.msra.mxu0 0.0
    %1849 = vmatprep.subr.mxu0 0.0
    %1850 = vmatpush2.msra.mxu0 0.0
    %1851 = vmatprep.subr.mxu0 0.0
    %1852 = vmatpush2.msra.mxu0 0.0
    %1853 = vmatprep.subr.mxu0 0.0
    %1854 = vmatpush2.msra.mxu0 0.0
    %1855 = vmatprep.subr.mxu0 0.0
    %1856 = vmatpush2.msra.mxu0 0.0
    %1857 = vmatprep.subr.mxu0 0.0
    %1858 = vmatpush2.msra.mxu0 0.0
    %1859 = vmatprep.subr.mxu0 0.0
    %1860 = vmatpush2.msra.mxu0 0.0
    %1861 = vmatprep.subr.mxu0 0.0
    %1862 = vmatpush2.msra.mxu0 0.0
    %1863 = vmatprep.subr.mxu0 0.0
    %1864 = vmatpush2.msra.mxu0 0.0
    %1865 = vmatprep.subr.mxu0 0.0
    %1866 = vmatpush2.msra.mxu0 0.0
    %1867 = vmatprep.subr.mxu0 0.0
    %1868 = vmatpush2.msra.mxu0 0.0
    %1869 = vmatprep.subr.mxu0 0.0
    %1870 = vmatpush2.msra.mxu0 0.0
    %1871 = vmatprep.subr.mxu0 0.0
    %1872 = vmatpush2.msra.mxu0 0.0
    %1873 = vmatprep.subr.mxu0 0.0
    %1874 = vmatpush2.msra.mxu0 0.0
    %1875 = vmatprep.subr.mxu0 0.0
    %1876 = vmatpush2.msra.mxu0 0.0
    %1877 = vmatprep.subr.mxu0 0.0
    %1878 = vmatpush2.msra.mxu0 0.0
    %1879 = vmatprep.mubr.f32.mxu0 0.0
    %v1880 = vand.u32 %v1486, 4294901760
    %1881 = vmatmul.mubr.f32.gmra.mxu0 %v1880
    %v1882 = vpop.f32.mrf.mxu0
    %v1883 = vadd.f32 %v1803, %v1882
    %v1884 = vpop.f32.mrf.mxu0
    %1885 = vdwg.mxu0
    %1886 = vmatprep.subr.mxu0 0.0
    %1887 = vmatpush1.msra.mxu0 0.0
    %1888 = vmatprep.subr.mxu0 0.0
    %1889 = vmatpush1.msra.mxu0 0.0
    %1890 = vmatprep.subr.mxu0 0.0
    %1891 = vmatpush1.msra.mxu0 0.0
    %1892 = vmatprep.subr.mxu0 0.0
    %1893 = vmatpush1.msra.mxu0 0.0
    %1894 = vmatprep.subr.mxu0 0.0
    %1895 = vmatpush1.msra.mxu0 0.0
    %1896 = vmatprep.subr.mxu0 0.0
    %1897 = vmatpush1.msra.mxu0 0.0
    %1898 = vmatprep.subr.mxu0 0.0
    %1899 = vmatpush1.msra.mxu0 0.0
    %1900 = vmatprep.subr.mxu0 0.0
    %1901 = vmatpush1.msra.mxu0 0.0
    %1902 = vmatprep.subr.mxu0 0.0
    %1903 = vmatpush1.msra.mxu0 0.0
    %1904 = vmatprep.subr.mxu0 0.0
    %1905 = vmatpush1.msra.mxu0 0.0
    %1906 = vmatprep.subr.mxu0 0.0
    %1907 = vmatpush1.msra.mxu0 0.0
    %1908 = vmatprep.subr.mxu0 0.0
    %1909 = vmatpush1.msra.mxu0 0.0
    %1910 = vmatprep.subr.mxu0 0.0
    %1911 = vmatpush1.msra.mxu0 0.0
    %1912 = vmatprep.subr.mxu0 0.0
    %v1913 = vand.u32 %v14, 4294901760
    %1914 = vmatpush1.msra.mxu0 %v1913
    %1915 = vmatprep.subr.mxu0 0.0
    %v1916 = vand.u32 %v13, 4294901760
    %1917 = vmatpush1.msra.mxu0 %v1916
    %1918 = vmatprep.subr.mxu0 0.0
    %v1919 = vand.u32 %v12, 4294901760
    %1920 = vmatpush1.msra.mxu0 %v1919
    %1921 = vmatprep.subr.mxu0 0.0
    %1922 = vmatpush2.msra.mxu0 0.0
    %1923 = vmatprep.subr.mxu0 0.0
    %1924 = vmatpush2.msra.mxu0 0.0
    %1925 = vmatprep.subr.mxu0 0.0
    %1926 = vmatpush2.msra.mxu0 0.0
    %1927 = vmatprep.subr.mxu0 0.0
    %1928 = vmatpush2.msra.mxu0 0.0
    %1929 = vmatprep.subr.mxu0 0.0
    %1930 = vmatpush2.msra.mxu0 0.0
    %1931 = vmatprep.subr.mxu0 0.0
    %1932 = vmatpush2.msra.mxu0 0.0
    %1933 = vmatprep.subr.mxu0 0.0
    %1934 = vmatpush2.msra.mxu0 0.0
    %1935 = vmatprep.subr.mxu0 0.0
    %1936 = vmatpush2.msra.mxu0 0.0
    %1937 = vmatprep.subr.mxu0 0.0
    %1938 = vmatpush2.msra.mxu0 0.0
    %1939 = vmatprep.subr.mxu0 0.0
    %1940 = vmatpush2.msra.mxu0 0.0
    %1941 = vmatprep.subr.mxu0 0.0
    %1942 = vmatpush2.msra.mxu0 0.0
    %1943 = vmatprep.subr.mxu0 0.0
    %1944 = vmatpush2.msra.mxu0 0.0
    %1945 = vmatprep.subr.mxu0 0.0
    %1946 = vmatpush2.msra.mxu0 0.0
    %1947 = vmatprep.subr.mxu0 0.0
    %1948 = vmatpush2.msra.mxu0 0.0
    %1949 = vmatprep.subr.mxu0 0.0
    %1950 = vmatpush2.msra.mxu0 0.0
    %1951 = vmatprep.subr.mxu0 0.0
    %1952 = vmatpush2.msra.mxu0 0.0
    %1953 = vmatprep.mubr.f32.mxu0 0.0
    %v1954 = vand.u32 %v1486, 4294901760
    %1955 = vmatmul.mubr.f32.gmra.mxu0 %v1954
    %v1956 = vpop.f32.mrf.mxu0
    %v1957 = vadd.f32 %v1883, %v1956
    %v1958 = vpop.f32.mrf.mxu0
    %1959 = vdwg.mxu0
    %1961 = vrot.lane.b32.xlu0 %v1957, 96
    %v1962 = vpop.permute.xlu0 %1961
    %vm1964 = vcmask 1048320
    %1965 = vst.msk [vmem:[#allocation2] sm:$0xff] %vm1964, %v1962
    // Predicated region
    $region10: #{tpu_custom_call.1} parent=1 // pred_check
      _
    $region11: #{tpu_custom_call.1} parent=1 // pred_check_branch
      %1967 = sbr.rel (0) target = $region13
    $region12: #{tpu_custom_call.1} parent=1 // pred_region
      %s1969 = ssub.s32 128, 128
      %1970 = vsyncadd [#allocation3], %s1969
      %s1972 = sshll.u32 [#allocation2], 4
      %s1973 = int_to_ptr.vmem [resolvable:$true] %s1972
      %1975 = dma.vmem_to_hbm [thread:$0]  %s1973, 128, %s2, [#allocation3]
    $region13: #{tpu_custom_call.1} parent=1 // pred_fallthru
      _
    // Predicated region
    $region14: #{tpu_custom_call.1} parent=1 // pred_check
      _
    $region15: #{tpu_custom_call.1} parent=1 // pred_check_branch
      %1977 = sbr.rel (0) target = $region17
    $region16: #{tpu_custom_call.1} parent=1 // pred_region
      %1978 = dma.done [#allocation3], 128
    $region17: #{tpu_custom_call.1} parent=1 // pred_fallthru
      _
    %1979 = vsyncpa [#allocation3], 1

</llo_original>
